<compile_context>
chip_gen: v5e
topology: v5e:2x2
jax: 0.10.0
libtpu: 0.0.40
codegen_flags: <defaults>
</compile_context>

<pallas_src>
import functools

import jax
import jax.numpy as jnp
from jax.experimental import pallas as pl
from jax.experimental.pallas import tpu as pltpu

LANE = 128          # TPU lane width: feature/hidden/class axes padded to this
NUM_LAYERS = 3
_NEG = -1e30        # "-inf" stand-in for masking padded class lanes


def _round_up(x, m):
    return ((x + m - 1) // m) * m


def net_gcn_kernel(a_ref, x_ref, pool_ref,
                   wconv_ref, bconv_ref, wl1_ref, bl1_ref, wl2_ref, bl2_ref,
                   out_ref,
                   h_ref, xw_ref, acc_ref, pooled_ref,
                   *, num_classes, num_nodes, row_tile, col_tile, mask_rows):
    """Grid = (layer, row_tile, col_tile).

    a_ref streams (row_tile, col_tile) tiles of A_hat; pool_ref streams
    (G, row_tile) tiles during the last layer; activations H, the XW staging
    buffer, the weight stack, the f32 row accumulator and the pooled
    accumulator live in VMEM scratch and persist across grid iterations."""
    l = pl.program_id(0)
    r = pl.program_id(1)
    k = pl.program_id(2)
    nl = pl.num_programs(0)
    nr = pl.num_programs(1)
    nk = pl.num_programs(2)

    # Very first grid step: seed H with node features, zero the pooled acc.
    @pl.when((l == 0) & (r == 0) & (k == 0))
    def _():
        h_ref[...] = x_ref[...]
        pooled_ref[...] = jnp.zeros_like(pooled_ref)

    # Start of every layer: XW = H @ W_l for the whole graph (only N x 128).
    @pl.when((r == 0) & (k == 0))
    def _():
        xw = jnp.dot(h_ref[...], wconv_ref[l],
                     preferred_element_type=jnp.float32)
        xw_ref[...] = xw.astype(jnp.bfloat16)

    # K-tiled aggregation: acc[rows] += A[rows, cols] @ XW[cols].
    @pl.when(k == 0)
    def _():
        acc_ref[...] = jnp.zeros_like(acc_ref)

    col_start = pl.multiple_of(k * col_tile, col_tile)
    acc_ref[...] += jnp.dot(a_ref[...], xw_ref[pl.ds(col_start, col_tile), :],
                            preferred_element_type=jnp.float32)

    # End of K loop: bias + ReLU, mask padded rows, write back row tile of H.
    @pl.when(k == nk - 1)
    def _():
        row_start = pl.multiple_of(r * row_tile, row_tile)
        h_new = jnp.maximum(acc_ref[...] + bconv_ref[l], 0.0)
        if mask_rows:
            row_ids = row_start + jax.lax.broadcasted_iota(
                jnp.int32, h_new.shape, 0)
            h_new = jnp.where(row_ids < num_nodes, h_new, 0.0)
        h_bf16 = h_new.astype(jnp.bfloat16)
        h_ref[pl.ds(row_start, row_tile), :] = h_bf16

        # Last layer: fold global_add_pool into the per-row-tile loop.
        @pl.when(l == nl - 1)
        def _():
            pooled_ref[...] += jnp.dot(pool_ref[...], h_bf16,
                                       preferred_element_type=jnp.float32)

    # Last grid step: MLP head + log_softmax.
    # Dropout is eval-mode identity.
    # TODO(synk): training-mode dropout would use pltpu.prng_seed/prng_random_bits.
    @pl.when((l == nl - 1) & (r == nr - 1) & (k == nk - 1))
    def _():
        z = jnp.dot(pooled_ref[...].astype(jnp.bfloat16), wl1_ref[...],
                    preferred_element_type=jnp.float32) + bl1_ref[...]
        z = jnp.maximum(z, 0.0)
        logits = jnp.dot(z.astype(jnp.bfloat16), wl2_ref[...],
                         preferred_element_type=jnp.float32) + bl2_ref[...]
        # Mask padded class lanes so the padded-to-128 log_softmax is exact.
        cmask = jax.lax.broadcasted_iota(jnp.int32, logits.shape, 1) < num_classes
        logits = jnp.where(cmask, logits, _NEG)
        m = jnp.max(logits, axis=-1, keepdims=True)
        s = logits - m
        lse = jnp.log(jnp.sum(jnp.exp(s), axis=-1, keepdims=True))
        out_ref[...] = s - lse


def _pad2(a, rows, cols):
    a = jnp.asarray(a, jnp.float32)
    if a.ndim == 1:
        a = a.reshape(1, -1)
    out = jnp.zeros((rows, cols), jnp.float32)
    return out.at[:a.shape[0], :a.shape[1]].set(a)


def _largest_divisor_tile(total, candidates):
    for c in candidates:
        if c <= total and total % c == 0:
            return c
    return 128


def net_gcn_forward(a_hat, x, pool, params):
    (w1, b1, w2, b2, w3, b3, wl1, bl1, wl2, bl2) = params
    N, F = x.shape
    nhid = w1.shape[1]
    num_classes = wl2.shape[1]
    G = pool.shape[0]
    assert max(F, nhid, num_classes) <= LANE, "single 128-lane tile assumed"

    # Pad node axis only to the lane width (128); no round-up to the row tile.
    n_pad = _round_up(N, LANE)
    # Row tile: largest of {512, 256, 128} that divides n_pad (multiple of 16,
    # so bf16 H stores stay unmasked full-sublane stores).
    row_tile = _largest_divisor_tile(n_pad, (512, 256, 128))
    # Column (K) tile: bounded so the double-buffered A tile stays small and
    # independent of N (fits v7x's 64 MiB VMEM; v6e/v5e get large tiles too).
    col_tile = 128
    for c in (2048, 1024, 512, 256, 128):
        if c <= n_pad and n_pad % c == 0 and 2 * row_tile * c * 2 <= (8 << 20):
            col_tile = c
            break
    num_row_tiles = n_pad // row_tile
    num_col_tiles = n_pad // col_tile
    g_pad = _round_up(G, 8)

    # bf16 dot operands; f32 accumulation happens inside the kernel.
    a_p = _pad2(a_hat, n_pad, n_pad).astype(jnp.bfloat16)
    x_p = _pad2(x, n_pad, LANE).astype(jnp.bfloat16)
    pool_p = _pad2(pool, g_pad, n_pad).astype(jnp.bfloat16)
    wconv = jnp.stack([_pad2(w, LANE, LANE) for w in (w1, w2, w3)]).astype(jnp.bfloat16)
    bconv = jnp.stack([_pad2(b, 1, LANE) for b in (b1, b2, b3)])      # f32
    wl1_p = _pad2(wl1, LANE, LANE).astype(jnp.bfloat16)
    bl1_p = _pad2(bl1, 1, LANE)
    wl2_p = _pad2(wl2, LANE, LANE).astype(jnp.bfloat16)
    bl2_p = _pad2(bl2, 1, LANE)

    def full_spec(shape):
        zeros = (0,) * len(shape)
        return pl.BlockSpec(shape, lambda l, r, k: zeros)

    # Pool tile tracks the row tile only during the last layer (earlier layers
    # keep block (0, 0) resident, so it is not re-DMA'd).
    def pool_index_map(l, r, k):
        return (0, jnp.where(l == NUM_LAYERS - 1, r, 0))

    grid_spec = pltpu.PrefetchScalarGridSpec(
        num_scalar_prefetch=0,
        grid=(NUM_LAYERS, num_row_tiles, num_col_tiles),
        in_specs=[
            pl.BlockSpec((row_tile, col_tile), lambda l, r, k: (r, k)),  # A_hat
            full_spec((n_pad, LANE)),              # x (padded node features)
            pl.BlockSpec((g_pad, row_tile), pool_index_map),  # pool (streamed)
            full_spec((NUM_LAYERS, LANE, LANE)),   # conv weights
            full_spec((NUM_LAYERS, 1, LANE)),      # conv biases (f32)
            full_spec((LANE, LANE)),               # wl1
            full_spec((1, LANE)),                  # bl1
            full_spec((LANE, LANE)),               # wl2
            full_spec((1, LANE)),                  # bl2
        ],
        out_specs=pl.BlockSpec((g_pad, LANE), lambda l, r, k: (0, 0)),
        scratch_shapes=[
            pltpu.VMEM((n_pad, LANE), jnp.bfloat16),   # H (carried activations)
            pltpu.VMEM((n_pad, LANE), jnp.bfloat16),   # H @ W_l staging
            pltpu.VMEM((row_tile, LANE), jnp.float32), # K-tiled f32 accumulator
            pltpu.VMEM((g_pad, LANE), jnp.float32),    # pooled accumulator
        ],
    )

    # VMEM footprint (each term counted once; double-buffering explicit).
    footprint = (
        2 * row_tile * col_tile * 2             # A tile, double-buffered (bf16)
        + n_pad * LANE * 2                      # x (resident)
        + 2 * g_pad * row_tile * 2              # pool tile, double-buffered
        + (NUM_LAYERS + 2) * LANE * LANE * 2    # weights (bf16)
        + (NUM_LAYERS + 2) * 8 * LANE * 4       # biases (f32, sublane-padded)
        + 2 * g_pad * LANE * 4                  # output (f32), double-buffered
        + 2 * n_pad * LANE * 2                  # H + XW scratch (bf16)
        + row_tile * LANE * 4                   # acc scratch (f32)
        + g_pad * LANE * 4                      # pooled scratch (f32)
    )
    try:
        physical_vmem = int(pltpu.get_tpu_info().vmem_capacity_bytes)
    except Exception:
        physical_vmem = 64 * 1024 * 1024
    vmem_limit = int(min(int(0.85 * physical_vmem),
                         max(32 * 1024 * 1024, int(1.5 * footprint))))
    vmem_limit = max(vmem_limit, int(1.2 * footprint))

    flops = 2 * (NUM_LAYERS * (n_pad * LANE * LANE + n_pad * n_pad * LANE)
                 + g_pad * n_pad * LANE + 2 * g_pad * LANE * LANE)
    bytes_accessed = (NUM_LAYERS * n_pad * n_pad * 2        # A read once per layer
                      + n_pad * LANE * 2 + g_pad * n_pad * 2
                      + (NUM_LAYERS + 2) * LANE * LANE * 2
                      + g_pad * LANE * 4)

    out_padded = pl.pallas_call(
        functools.partial(net_gcn_kernel,
                          num_classes=num_classes,
                          num_nodes=N,
                          row_tile=row_tile,
                          col_tile=col_tile,
                          mask_rows=(n_pad != N)),
        out_shape=jax.ShapeDtypeStruct((g_pad, LANE), jnp.float32),
        grid_spec=grid_spec,
        compiler_params=pltpu.CompilerParams(
            # All axes sequential: layer axis is a true dependency, the
            # row/col axes carry the H / acc scratch (no megacore sharding).
            dimension_semantics=("arbitrary", "arbitrary", "arbitrary"),
            vmem_limit_bytes=vmem_limit,
        ),
        cost_estimate=pl.CostEstimate(
            flops=int(flops),
            transcendentals=int(2 * g_pad * LANE),
            bytes_accessed=int(bytes_accessed),
        ),
    )(a_p, x_p, pool_p, wconv, bconv, wl1_p, bl1_p, wl2_p, bl2_p)

    return out_padded[:G, :num_classes]


def build_normalized_adjacency(edge_index, num_nodes):
    """Dense D^-1/2 (A + I) D^-1/2 from edge_index (2, E), src -> dst."""
    src, dst = edge_index[0], edge_index[1]
    adj = jnp.zeros((num_nodes, num_nodes), jnp.float32)
    adj = adj.at[dst, src].set(1.0)
    adj = adj + jnp.eye(num_nodes, dtype=jnp.float32)
    deg = jnp.sum(adj, axis=1)
    dinv = jnp.where(deg > 0, 1.0 / jnp.sqrt(deg), 0.0)
    return adj * dinv[:, None] * dinv[None, :]


def build_pool_matrix(batch, num_graphs):
    """[G, N] one-hot assignment: pool @ x == global_add_pool(x, batch)."""
    return (batch[None, :] == jnp.arange(num_graphs)[:, None]).astype(jnp.float32)


if __name__ == "__main__":
    # hyperparameters (args)
    num_features = 4
    nhid = 32
    num_classes = 4
    N = 16     # nodes
    G = 2      # graphs in the batch

    key = jax.random.PRNGKey(0)
    keys = jax.random.split(key, 12)

    def init_w(k, fan_in, fan_out):
        return jax.random.uniform(k, (fan_in, fan_out), jnp.float32,
                                  -1.0 / jnp.sqrt(fan_in), 1.0 / jnp.sqrt(fan_in))

    w1 = init_w(keys[0], num_features, nhid)
    b1 = jax.random.normal(keys[1], (nhid,), jnp.float32) * 0.01
    w2 = init_w(keys[2], nhid, nhid)
    b2 = jax.random.normal(keys[3], (nhid,), jnp.float32) * 0.01
    w3 = init_w(keys[4], nhid, nhid)
    b3 = jax.random.normal(keys[5], (nhid,), jnp.float32) * 0.01
    wl1 = init_w(keys[6], nhid, nhid)
    bl1 = jax.random.normal(keys[7], (nhid,), jnp.float32) * 0.01
    wl2 = init_w(keys[8], nhid, num_classes)
    bl2 = jax.random.normal(keys[9], (num_classes,), jnp.float32) * 0.01
    params = (w1, b1, w2, b2, w3, b3, wl1, bl1, wl2, bl2)

    # node features
    x = jax.random.normal(keys[10], (N, num_features), jnp.float32)

    # two ring graphs, symmetric edges
    srcs, dsts = [], []
    for g in range(G):
        base = g * (N // G)
        n_g = N // G
        for i in range(n_g):
            a_, b_ = base + i, base + (i + 1) % n_g
            srcs += [a_, b_]
            dsts += [b_, a_]
    edge_index = jnp.array([srcs, dsts], dtype=jnp.int32)
    batch = jnp.repeat(jnp.arange(G, dtype=jnp.int32), N // G)

    a_hat = build_normalized_adjacency(edge_index, N)
    pool = build_pool_matrix(batch, G)

    out = net_gcn_forward(a_hat, x, pool, params)
    out = jax.block_until_ready(out)

    # Pure-JAX reference that emulates the kernel's bf16-operand / f32-accum dots.
    def ref_forward(a, xin):
        bf = lambda t: t.astype(jnp.bfloat16)

        def gcn(h, w, b):
            xw = jnp.dot(bf(h), bf(w), preferred_element_type=jnp.float32)
            agg = jnp.dot(bf(a), bf(xw).astype(jnp.bfloat16),
                          preferred_element_type=jnp.float32)
            return jnp.maximum(agg + b, 0.0)

        h = gcn(xin, w1, b1)
        h = gcn(h, w2, b2)
        h = gcn(h, w3, b3)
        p = jnp.dot(bf(pool), bf(h), preferred_element_type=jnp.float32)
        z = jnp.maximum(
            jnp.dot(bf(p), bf(wl1), preferred_element_type=jnp.float32) + bl1, 0.0)
        logits = jnp.dot(bf(z), bf(wl2), preferred_element_type=jnp.float32) + bl2
        return jax.nn.log_softmax(logits, axis=-1)

    expected = ref_forward(a_hat, x)
    assert out.shape == (G, num_classes)
    assert jnp.allclose(out, expected, atol=5e-3, rtol=5e-3), (
        f"max abs err {jnp.max(jnp.abs(out - expected))}")

    print("KERNEL_OK")
</pallas_src>

<mosaic_0001>
module attributes {stable_mosaic.version = 11 : i64} {
  func.func @net_gcn_kernel(%arg0: i32, %arg1: i32, %arg2: i32, %arg3: memref<128x128xbf16, #tpu.memory_space<vmem>>, %arg4: memref<128x128xbf16, #tpu.memory_space<vmem>>, %arg5: memref<8x128xbf16, #tpu.memory_space<vmem>>, %arg6: memref<3x128x128xbf16, #tpu.memory_space<vmem>>, %arg7: memref<3x1x128xf32, #tpu.memory_space<vmem>>, %arg8: memref<128x128xbf16, #tpu.memory_space<vmem>>, %arg9: memref<1x128xf32, #tpu.memory_space<vmem>>, %arg10: memref<128x128xbf16, #tpu.memory_space<vmem>>, %arg11: memref<1x128xf32, #tpu.memory_space<vmem>>, %arg12: memref<8x128xf32, #tpu.memory_space<vmem>>, %arg13: memref<128x128xbf16, #tpu.memory_space<vmem>>, %arg14: memref<128x128xbf16, #tpu.memory_space<vmem>>, %arg15: memref<128x128xf32, #tpu.memory_space<vmem>>, %arg16: memref<8x128xf32, #tpu.memory_space<vmem>>) attributes {dimension_semantics = [#tpu.dimension_semantics<arbitrary>, #tpu.dimension_semantics<arbitrary>, #tpu.dimension_semantics<arbitrary>], iteration_bounds = array<i64: 3, 1, 1>, scalar_prefetch = 0 : i64, scratch_operands = 4 : i64, tpu.core_type = #tpu.core_type<tc>, window_params = [{transform_indices = @transform_0, window_bounds = array<i64: 128, 128>}, {pipeline_mode = #tpu.pipeline_mode<synchronous>, transform_indices = @transform_1, window_bounds = array<i64: 128, 128>}, {transform_indices = @transform_2, window_bounds = array<i64: 8, 128>}, {pipeline_mode = #tpu.pipeline_mode<synchronous>, transform_indices = @transform_3, window_bounds = array<i64: 3, 128, 128>}, {pipeline_mode = #tpu.pipeline_mode<synchronous>, transform_indices = @transform_4, window_bounds = array<i64: 3, 1, 128>}, {pipeline_mode = #tpu.pipeline_mode<synchronous>, transform_indices = @transform_5, window_bounds = array<i64: 128, 128>}, {pipeline_mode = #tpu.pipeline_mode<synchronous>, transform_indices = @transform_6, window_bounds = array<i64: 1, 128>}, {pipeline_mode = #tpu.pipeline_mode<synchronous>, transform_indices = @transform_7, window_bounds = array<i64: 128, 128>}, {pipeline_mode = #tpu.pipeline_mode<synchronous>, transform_indices = @transform_8, window_bounds = array<i64: 1, 128>}, {pipeline_mode = #tpu.pipeline_mode<synchronous>, transform_indices = @transform_9, window_bounds = array<i64: 8, 128>}]} {
    %c0_i32 = arith.constant 0 : i32
    %0 = arith.cmpi eq, %arg0, %c0_i32 : i32
    %c0_i32_0 = arith.constant 0 : i32
    %1 = arith.cmpi eq, %arg1, %c0_i32_0 : i32
    %2 = arith.andi %0, %1 : i1
    %c0_i32_1 = arith.constant 0 : i32
    %3 = arith.cmpi eq, %arg2, %c0_i32_1 : i32
    %4 = arith.andi %2, %3 : i1
    %5 = arith.extui %4 : i1 to i32
    %c0_i32_2 = arith.constant 0 : i32
    %6 = arith.cmpi ne, %5, %c0_i32_2 : i32
    scf.if %6 {
      %c0_19 = arith.constant 0 : index
      %c0_20 = arith.constant 0 : index
      %34 = vector.load %arg4[%c0_19, %c0_20] : memref<128x128xbf16, #tpu.memory_space<vmem>>, vector<128x128xbf16>
      %c0_21 = arith.constant 0 : index
      %c0_22 = arith.constant 0 : index
      %35 = vector.load %arg13[%c0_21, %c0_22] : memref<128x128xbf16, #tpu.memory_space<vmem>>, vector<128x128xbf16>
      tpu.vector_store %arg13[%c0_21, %c0_22], %34 {strides = array<i32>} : memref<128x128xbf16, #tpu.memory_space<vmem>>, vector<128x128xbf16>,
      %cst_23 = arith.constant 0.000000e+00 : f32
      %36 = vector.broadcast %cst_23 : f32 to vector<8x128xf32>
      %c0_24 = arith.constant 0 : index
      %c0_25 = arith.constant 0 : index
      %37 = vector.load %arg16[%c0_24, %c0_25] : memref<8x128xf32, #tpu.memory_space<vmem>>, vector<8x128xf32>
      tpu.vector_store %arg16[%c0_24, %c0_25], %36 {strides = array<i32>} : memref<8x128xf32, #tpu.memory_space<vmem>>, vector<8x128xf32>,
    } else {
    }
    %c0_i32_3 = arith.constant 0 : i32
    %7 = arith.cmpi eq, %arg1, %c0_i32_3 : i32
    %c0_i32_4 = arith.constant 0 : i32
    %8 = arith.cmpi eq, %arg2, %c0_i32_4 : i32
    %9 = arith.andi %7, %8 : i1
    %10 = arith.extui %9 : i1 to i32
    %c0_i32_5 = arith.constant 0 : i32
    %11 = arith.cmpi ne, %10, %c0_i32_5 : i32
    scf.if %11 {
      %c0_19 = arith.constant 0 : index
      %c0_20 = arith.constant 0 : index
      %34 = vector.load %arg13[%c0_19, %c0_20] : memref<128x128xbf16, #tpu.memory_space<vmem>>, vector<128x128xbf16>
      %35 = arith.index_cast %arg0 : i32 to index
      %c0_21 = arith.constant 0 : index
      %c0_22 = arith.constant 0 : index
      %36 = vector.load %arg6[%35, %c0_21, %c0_22] : memref<3x128x128xbf16, #tpu.memory_space<vmem>>, vector<1x128x128xbf16>
      %37 = vector.shape_cast %36 : vector<1x128x128xbf16> to vector<128x128xbf16>
      %cst_23 = arith.constant dense<0.000000e+00> : vector<128x128xf32>
      %38 = tpu.matmul %34, %37, %cst_23 {dimension_numbers = #tpu.dot_dimension_numbers<[1], [0], [0], [1], [0, 0, 1, 1], [], []>} : vector<128x128xbf16>, vector<128x128xbf16>, vector<128x128xf32> -> vector<128x128xf32>
      %39 = arith.truncf %38 : vector<128x128xf32> to vector<128x128xbf16>
      %c0_24 = arith.constant 0 : index
      %c0_25 = arith.constant 0 : index
      %40 = vector.load %arg14[%c0_24, %c0_25] : memref<128x128xbf16, #tpu.memory_space<vmem>>, vector<128x128xbf16>
      tpu.vector_store %arg14[%c0_24, %c0_25], %39 {strides = array<i32>} : memref<128x128xbf16, #tpu.memory_space<vmem>>, vector<128x128xbf16>,
    } else {
    }
    %c0_i32_6 = arith.constant 0 : i32
    %12 = arith.cmpi eq, %arg2, %c0_i32_6 : i32
    %13 = arith.extui %12 : i1 to i32
    %c0_i32_7 = arith.constant 0 : i32
    %14 = arith.cmpi ne, %13, %c0_i32_7 : i32
    scf.if %14 {
      %cst_19 = arith.constant 0.000000e+00 : f32
      %34 = vector.broadcast %cst_19 : f32 to vector<128x128xf32>
      %c0_20 = arith.constant 0 : index
      %c0_21 = arith.constant 0 : index
      %35 = vector.load %arg15[%c0_20, %c0_21] : memref<128x128xf32, #tpu.memory_space<vmem>>, vector<128x128xf32>
      tpu.vector_store %arg15[%c0_20, %c0_21], %34 {strides = array<i32>} : memref<128x128xf32, #tpu.memory_space<vmem>>, vector<128x128xf32>,
    } else {
    }
    %c128_i32 = arith.constant 128 : i32
    %15 = arith.muli %arg2, %c128_i32 : i32
    %16 = tpu.assume_multiple %15, 128 : i32
    %c0 = arith.constant 0 : index
    %c0_8 = arith.constant 0 : index
    %17 = vector.load %arg15[%c0, %c0_8] : memref<128x128xf32, #tpu.memory_space<vmem>>, vector<128x128xf32>
    %c0_9 = arith.constant 0 : index
    %c0_10 = arith.constant 0 : index
    %18 = vector.load %arg3[%c0_9, %c0_10] : memref<128x128xbf16, #tpu.memory_space<vmem>>, vector<128x128xbf16>
    %19 = arith.index_cast %16 : i32 to index
    %c0_11 = arith.constant 0 : index
    %20 = vector.load %arg14[%19, %c0_11] : memref<128x128xbf16, #tpu.memory_space<vmem>>, vector<128x128xbf16>
    %cst = arith.constant dense<0.000000e+00> : vector<128x128xf32>
    %21 = tpu.matmul %18, %20, %cst {dimension_numbers = #tpu.dot_dimension_numbers<[1], [0], [0], [1], [0, 0, 1, 1], [], []>} : vector<128x128xbf16>, vector<128x128xbf16>, vector<128x128xf32> -> vector<128x128xf32>
    %22 = arith.addf %17, %21 : vector<128x128xf32>
    %c0_12 = arith.constant 0 : index
    %c0_13 = arith.constant 0 : index
    %23 = vector.load %arg15[%c0_12, %c0_13] : memref<128x128xf32, #tpu.memory_space<vmem>>, vector<128x128xf32>
    tpu.vector_store %arg15[%c0_12, %c0_13], %22 {strides = array<i32>} : memref<128x128xf32, #tpu.memory_space<vmem>>, vector<128x128xf32>,
    %c0_i32_14 = arith.constant 0 : i32
    %24 = arith.cmpi eq, %arg2, %c0_i32_14 : i32
    %25 = arith.extui %24 : i1 to i32
    %c0_i32_15 = arith.constant 0 : i32
    %26 = arith.cmpi ne, %25, %c0_i32_15 : i32
    scf.if %26 {
      %c128_i32_19 = arith.constant 128 : i32
      %34 = arith.muli %arg1, %c128_i32_19 : i32
      %35 = tpu.assume_multiple %34, 128 : i32
      %c0_20 = arith.constant 0 : index
      %c0_21 = arith.constant 0 : index
      %36 = vector.load %arg15[%c0_20, %c0_21] : memref<128x128xf32, #tpu.memory_space<vmem>>, vector<128x128xf32>
      %37 = arith.index_cast %arg0 : i32 to index
      %c0_22 = arith.constant 0 : index
      %c0_23 = arith.constant 0 : index
      %38 = vector.load %arg7[%37, %c0_22, %c0_23] : memref<3x1x128xf32, #tpu.memory_space<vmem>>, vector<1x1x128xf32>
      %39 = vector.shape_cast %38 : vector<1x1x128xf32> to vector<1x128xf32>
      %40 = vector.broadcast %39 : vector<1x128xf32> to vector<128x128xf32>
      %41 = arith.addf %36, %40 : vector<128x128xf32>
      %cst_24 = arith.constant 0.000000e+00 : f32
      %42 = vector.broadcast %cst_24 : f32 to vector<128x128xf32>
      %43 = arith.maximumf %41, %42 : vector<128x128xf32>
      %44 = tpu.iota {dimensions = array<i32: 0>} : vector<128x128xi32>
      %45 = vector.broadcast %35 : i32 to vector<128x128xi32>
      %46 = arith.addi %45, %44 : vector<128x128xi32>
      %c16_i32 = arith.constant 16 : i32
      %47 = vector.broadcast %c16_i32 : i32 to vector<128x128xi32>
      %48 = arith.cmpi slt, %46, %47 : vector<128x128xi32>
      %cst_25 = arith.constant 0.000000e+00 : f32
      %49 = vector.broadcast %cst_25 : f32 to vector<128x128xf32>
      %50 = arith.select %48, %43, %49 : vector<128x128xi1>, vector<128x128xf32>
      %51 = arith.truncf %50 : vector<128x128xf32> to vector<128x128xbf16>
      %52 = arith.index_cast %35 : i32 to index
      %c0_26 = arith.constant 0 : index
      %53 = vector.load %arg13[%52, %c0_26] : memref<128x128xbf16, #tpu.memory_space<vmem>>, vector<128x128xbf16>
      tpu.vector_store %arg13[%52, %c0_26], %51 {strides = array<i32>} : memref<128x128xbf16, #tpu.memory_space<vmem>>, vector<128x128xbf16>,
      %c2_i32_27 = arith.constant 2 : i32
      %54 = arith.cmpi eq, %arg0, %c2_i32_27 : i32
      %55 = arith.extui %54 : i1 to i32
      %c0_i32_28 = arith.constant 0 : i32
      %56 = arith.cmpi ne, %55, %c0_i32_28 : i32
      scf.if %56 {
        %c0_29 = arith.constant 0 : index
        %c0_30 = arith.constant 0 : index
        %57 = vector.load %arg16[%c0_29, %c0_30] : memref<8x128xf32, #tpu.memory_space<vmem>>, vector<8x128xf32>
        %c0_31 = arith.constant 0 : index
        %c0_32 = arith.constant 0 : index
        %58 = vector.load %arg5[%c0_31, %c0_32] : memref<8x128xbf16, #tpu.memory_space<vmem>>, vector<8x128xbf16>
        %cst_33 = arith.constant dense<0.000000e+00> : vector<8x128xf32>
        %59 = tpu.matmul %58, %51, %cst_33 {dimension_numbers = #tpu.dot_dimension_numbers<[1], [0], [0], [1], [0, 0, 1, 1], [], []>} : vector<8x128xbf16>, vector<128x128xbf16>, vector<8x128xf32> -> vector<8x128xf32>
        %60 = arith.addf %57, %59 : vector<8x128xf32>
        %c0_34 = arith.constant 0 : index
        %c0_35 = arith.constant 0 : index
        %61 = vector.load %arg16[%c0_34, %c0_35] : memref<8x128xf32, #tpu.memory_space<vmem>>, vector<8x128xf32>
        tpu.vector_store %arg16[%c0_34, %c0_35], %60 {strides = array<i32>} : memref<8x128xf32, #tpu.memory_space<vmem>>, vector<8x128xf32>,
      } else {
      }
    } else {
    }
    %c2_i32 = arith.constant 2 : i32
    %27 = arith.cmpi eq, %arg0, %c2_i32 : i32
    %c0_i32_16 = arith.constant 0 : i32
    %28 = arith.cmpi eq, %arg1, %c0_i32_16 : i32
    %29 = arith.andi %27, %28 : i1
    %c0_i32_17 = arith.constant 0 : i32
    %30 = arith.cmpi eq, %arg2, %c0_i32_17 : i32
    %31 = arith.andi %29, %30 : i1
    %32 = arith.extui %31 : i1 to i32
    %c0_i32_18 = arith.constant 0 : i32
    %33 = arith.cmpi ne, %32, %c0_i32_18 : i32
    scf.if %33 {
      %c0_19 = arith.constant 0 : index
      %c0_20 = arith.constant 0 : index
      %34 = vector.load %arg16[%c0_19, %c0_20] : memref<8x128xf32, #tpu.memory_space<vmem>>, vector<8x128xf32>
      %35 = arith.truncf %34 : vector<8x128xf32> to vector<8x128xbf16>
      %c0_21 = arith.constant 0 : index
      %c0_22 = arith.constant 0 : index
      %36 = vector.load %arg8[%c0_21, %c0_22] : memref<128x128xbf16, #tpu.memory_space<vmem>>, vector<128x128xbf16>
      %cst_23 = arith.constant dense<0.000000e+00> : vector<8x128xf32>
      %37 = tpu.matmul %35, %36, %cst_23 {dimension_numbers = #tpu.dot_dimension_numbers<[1], [0], [0], [1], [0, 0, 1, 1], [], []>} : vector<8x128xbf16>, vector<128x128xbf16>, vector<8x128xf32> -> vector<8x128xf32>
      %c0_24 = arith.constant 0 : index
      %c0_25 = arith.constant 0 : index
      %38 = vector.load %arg9[%c0_24, %c0_25] : memref<1x128xf32, #tpu.memory_space<vmem>>, vector<1x128xf32>
      %39 = vector.broadcast %38 : vector<1x128xf32> to vector<8x128xf32>
      %40 = arith.addf %37, %39 : vector<8x128xf32>
      %cst_26 = arith.constant 0.000000e+00 : f32
      %41 = vector.broadcast %cst_26 : f32 to vector<8x128xf32>
      %42 = arith.maximumf %40, %41 : vector<8x128xf32>
      %43 = arith.truncf %42 : vector<8x128xf32> to vector<8x128xbf16>
      %c0_27 = arith.constant 0 : index
      %c0_28 = arith.constant 0 : index
      %44 = vector.load %arg10[%c0_27, %c0_28] : memref<128x128xbf16, #tpu.memory_space<vmem>>, vector<128x128xbf16>
      %cst_29 = arith.constant dense<0.000000e+00> : vector<8x128xf32>
      %45 = tpu.matmul %43, %44, %cst_29 {dimension_numbers = #tpu.dot_dimension_numbers<[1], [0], [0], [1], [0, 0, 1, 1], [], []>} : vector<8x128xbf16>, vector<128x128xbf16>, vector<8x128xf32> -> vector<8x128xf32>
      %c0_30 = arith.constant 0 : index
      %c0_31 = arith.constant 0 : index
      %46 = vector.load %arg11[%c0_30, %c0_31] : memref<1x128xf32, #tpu.memory_space<vmem>>, vector<1x128xf32>
      %47 = vector.broadcast %46 : vector<1x128xf32> to vector<8x128xf32>
      %48 = arith.addf %45, %47 : vector<8x128xf32>
      %49 = tpu.iota {dimensions = array<i32: 1>} : vector<8x128xi32>
      %c4_i32 = arith.constant 4 : i32
      %50 = vector.broadcast %c4_i32 : i32 to vector<8x128xi32>
      %51 = arith.cmpi slt, %49, %50 : vector<8x128xi32>
      %cst_32 = arith.constant -1.000000e+30 : f32
      %52 = vector.broadcast %cst_32 : f32 to vector<8x128xf32>
      %53 = arith.select %51, %48, %52 : vector<8x128xi1>, vector<8x128xf32>
      %cst_33 = arith.constant dense<0xFF800000> : vector<8xf32>
      %54 = vector.multi_reduction <maximumf>, %53, %cst_33 [1] : vector<8x128xf32> to vector<8xf32>
      %55 = vector.shape_cast %54 : vector<8xf32> to vector<8x1xf32>
      %56 = vector.broadcast %55 : vector<8x1xf32> to vector<8x128xf32>
      %57 = arith.subf %53, %56 : vector<8x128xf32>
      %58 = math.exp %57 : vector<8x128xf32>
      %cst_34 = arith.constant dense<0.000000e+00> : vector<8xf32>
      %59 = vector.multi_reduction <add>, %58, %cst_34 [1] : vector<8x128xf32> to vector<8xf32>
      %60 = vector.shape_cast %59 : vector<8xf32> to vector<8x1xf32>
      %61 = math.log %60 : vector<8x1xf32>
      %62 = vector.broadcast %61 : vector<8x1xf32> to vector<8x128xf32>
      %63 = arith.subf %57, %62 : vector<8x128xf32>
      %c0_35 = arith.constant 0 : index
      %c0_36 = arith.constant 0 : index
      %64 = vector.load %arg12[%c0_35, %c0_36] : memref<8x128xf32, #tpu.memory_space<vmem>>, vector<8x128xf32>
      tpu.vector_store %arg12[%c0_35, %c0_36], %63 {strides = array<i32>} : memref<8x128xf32, #tpu.memory_space<vmem>>, vector<8x128xf32>,
    } else {
    }
    return
  }
  func.func @transform_0(%arg0: i32, %arg1: i32, %arg2: i32) -> (i32, i32) {
    %c0_i32 = arith.constant 0 : i32
    return %arg1, %arg2 : i32, i32
  }
  func.func @transform_1(%arg0: i32, %arg1: i32, %arg2: i32) -> (i32, i32) {
    %c0_i32 = arith.constant 0 : i32
    %c0_i32_0 = arith.constant 0 : i32
    %c0_i32_1 = arith.constant 0 : i32
    return %c0_i32, %c0_i32_0 : i32, i32
  }
  func.func @transform_2(%arg0: i32, %arg1: i32, %arg2: i32) -> (i32, i32) {
    %c2_i32 = arith.constant 2 : i32
    %0 = arith.cmpi eq, %arg0, %c2_i32 : i32
    %c0_i32 = arith.constant 0 : i32
    %1 = arith.select %0, %arg1, %c0_i32 : i32
    %c0_i32_0 = arith.constant 0 : i32
    %c0_i32_1 = arith.constant 0 : i32
    return %c0_i32_0, %1 : i32, i32
  }
  func.func @transform_3(%arg0: i32, %arg1: i32, %arg2: i32) -> (i32, i32, i32) {
    %c0_i32 = arith.constant 0 : i32
    %c0_i32_0 = arith.constant 0 : i32
    %c0_i32_1 = arith.constant 0 : i32
    %c0_i32_2 = arith.constant 0 : i32
    return %c0_i32, %c0_i32_0, %c0_i32_1 : i32, i32, i32
  }
  func.func @transform_4(%arg0: i32, %arg1: i32, %arg2: i32) -> (i32, i32, i32) {
    %c0_i32 = arith.constant 0 : i32
    %c0_i32_0 = arith.constant 0 : i32
    %c0_i32_1 = arith.constant 0 : i32
    %c0_i32_2 = arith.constant 0 : i32
    return %c0_i32, %c0_i32_0, %c0_i32_1 : i32, i32, i32
  }
  func.func @transform_5(%arg0: i32, %arg1: i32, %arg2: i32) -> (i32, i32) {
    %c0_i32 = arith.constant 0 : i32
    %c0_i32_0 = arith.constant 0 : i32
    %c0_i32_1 = arith.constant 0 : i32
    return %c0_i32, %c0_i32_0 : i32, i32
  }
  func.func @transform_6(%arg0: i32, %arg1: i32, %arg2: i32) -> (i32, i32) {
    %c0_i32 = arith.constant 0 : i32
    %c0_i32_0 = arith.constant 0 : i32
    %c0_i32_1 = arith.constant 0 : i32
    return %c0_i32, %c0_i32_0 : i32, i32
  }
  func.func @transform_7(%arg0: i32, %arg1: i32, %arg2: i32) -> (i32, i32) {
    %c0_i32 = arith.constant 0 : i32
    %c0_i32_0 = arith.constant 0 : i32
    %c0_i32_1 = arith.constant 0 : i32
    return %c0_i32, %c0_i32_0 : i32, i32
  }
  func.func @transform_8(%arg0: i32, %arg1: i32, %arg2: i32) -> (i32, i32) {
    %c0_i32 = arith.constant 0 : i32
    %c0_i32_0 = arith.constant 0 : i32
    %c0_i32_1 = arith.constant 0 : i32
    return %c0_i32, %c0_i32_0 : i32, i32
  }
  func.func @transform_9(%arg0: i32, %arg1: i32, %arg2: i32) -> (i32, i32) {
    %c0_i32 = arith.constant 0 : i32
    %c0_i32_0 = arith.constant 0 : i32
    %c0_i32_1 = arith.constant 0 : i32
    return %c0_i32, %c0_i32_0 : i32, i32
  }
}

</mosaic_0001>

<llo_original>
// kernel: tpu_custom_call.1
$region0: #{tpu_custom_call.1}
  #allocation0 [shape = 'u32[]', space=smem, size = 0x4, offset = 0x4, fixed_abs, tag = 'smem constant byte address 0x4 - core index']
  #allocation1 [shape = 'u32[72,128]{1,0:T(1,128)}', space=vmem, size = 0x9000, scoped, tag = 'internal scratch']
  #allocation2 [shape = 'bf16[128,128]{1,0:T(8,128)(2,1)}', space=vmem, size = 0x8000, scoped, tag = 'scratch operand']
  #allocation3 [shape = 'bf16[128,128]{1,0:T(8,128)(2,1)}', space=vmem, size = 0x8000, scoped, tag = 'scratch operand']
  #allocation4 [shape = 'f32[128,128]{1,0:T(8,128)}', space=vmem, size = 0x10000, scoped, tag = 'scratch operand']
  #allocation5 [shape = 'f32[8,128]{1,0:T(8,128)}', space=vmem, size = 0x1000, scoped, tag = 'scratch operand']
  %s0 = inlined_call_operand.hbm [shape: bf16[128,128], index: 0, kind: input, shape index: {}]
  %s1 = inlined_call_operand.hbm [shape: bf16[128,128], index: 1, kind: input, shape index: {}]
  %s2 = inlined_call_operand.hbm [shape: bf16[8,128], index: 2, kind: input, shape index: {}]
  %s3 = inlined_call_operand.hbm [shape: bf16[3,128,128], index: 3, kind: input, shape index: {}]
  %s4 = inlined_call_operand.vmem [shape: f32[3,1,128], index: 4, kind: input, shape index: {}]
  %s5 = inlined_call_operand.hbm [shape: bf16[128,128], index: 5, kind: input, shape index: {}]
  %s6 = inlined_call_operand.vmem [shape: f32[1,128], index: 6, kind: input, shape index: {}]
  %s7 = inlined_call_operand.hbm [shape: bf16[128,128], index: 7, kind: input, shape index: {}]
  %s8 = inlined_call_operand.vmem [shape: f32[1,128], index: 8, kind: input, shape index: {}]
  %s9 = inlined_call_operand.hbm [shape: f32[8,128], index: 9, kind: output, shape index: {}]
  %s10 = sld [smem:[#allocation0]]
  $region117: #{tpu_custom_call.1} parent=0
    _
  %s12 = ssub.s32 1, %s10
  %s13 = scalar_select 0, %s12, %s10
  $region1: #{tpu_custom_call.1} parent=0
    #allocation6 [shape = 'u8[32768]{0}', space=vmem, size = 0x8000, scoped, tag = 'input window, operand 0, single buffered']
    #allocation7 [shape = 's32[2]{0}', space=sflag, size = 0x8, scoped, tag = 'scoped memory for tpu_custom_call.1']
    #allocation8 [shape = 's32[2]{0}', space=sflag, size = 0x8, scoped, tag = 'scoped memory for tpu_custom_call.1']
    #allocation9 [shape = 'u8[32768]{0}', space=vmem, size = 0x8000, scoped, tag = 'input window, operand 1, single buffered']
    #allocation10 [shape = 's32[1]{0}', space=sflag, size = 0x4, scoped, tag = 'scoped memory for tpu_custom_call.1']
    #allocation11 [shape = 'u8[4096]{0}', space=vmem, size = 0x1000, scoped, tag = 'input window, operand 2']
    #allocation12 [shape = 'u8[98304]{0}', space=vmem, size = 0x18000, scoped, tag = 'input window, operand 3, single buffered']
    #allocation13 [shape = 'u8[32768]{0}', space=vmem, size = 0x8000, scoped, tag = 'input window, operand 5, single buffered']
    #allocation14 [shape = 's32[1]{0}', space=sflag, size = 0x4, scoped, tag = 'scoped memory for tpu_custom_call.1']
    #allocation15 [shape = 'u8[32768]{0}', space=vmem, size = 0x8000, scoped, tag = 'input window, operand 7, single buffered']
    #allocation16 [shape = 'u8[4096]{0}', space=vmem, size = 0x1000, scoped, tag = 'output window, operand 0, single buffered']
    %14 = vsyncpa [#allocation7], 0
    %15 = vsyncpa [#allocation10], 0
    %16 = vsyncpa [#allocation14], 0
    %17 = vsyncpa [#allocation8], 0
    loop: start=0, step=1, limit=5
    $region2: #{tpu_custom_call.1} parent=1 // loop_pre_header
      _
    $region3: #{tpu_custom_call.1} parent=1 // loop_header
      %s19 = sphi 0, %s23
      %p20 = scmp.ge.s32.totalorder %s19, 5
      %s26 = sphi 0, %s45
      %s27 = sphi 0, %s41
      %s28 = sphi 0, %s37
      %s29 = sphi 0, %s26
      %s30 = sphi 0, %s27
      %s31 = sphi 0, %s28
      %s32 = sphi 0, %s29
      %s33 = sphi 0, %s30
      %s34 = sphi 0, %s31
      %s50 = sphi 0, %s52
      %s53 = sphi 0, %s50
      %s54 = sphi 0, %s53
      %s70 = sphi 0, %s54
      %s74 = sphi 0, %s74
      %s76 = sphi 0, %s74
      %s77 = sphi 0, %s76
      %s91 = sphi 0, %s77
      %s101 = sphi 0, %s103
      %s104 = sphi 0, %s101
      %s105 = sphi 0, %s104
      %s121 = sphi 0, %s105
      %s125 = sphi 0, %s125
      %s127 = sphi 0, %s125
      %s128 = sphi 0, %s127
      %s142 = sphi 0, %s128
      %s146 = sphi 0, %s146
      %s148 = sphi 0, %s146
      %s149 = sphi 0, %s148
      %s163 = sphi 0, %s149
      %s167 = sphi 0, %s167
      %s169 = sphi 0, %s167
      %s170 = sphi 0, %s169
      %s184 = sphi 0, %s170
      %s188 = sphi 0, %s188
      %s190 = sphi 0, %s188
      %s191 = sphi 0, %s190
      %s205 = sphi 0, %s191
      %s209 = sphi 0, %s209
      %s211 = sphi 0, %s209
      %s212 = sphi 0, %s211
      %s226 = sphi 0, %s212
      %s230 = sphi 0, %s230
      %s232 = sphi 0, %s230
      %s233 = sphi 0, %s232
      %s247 = sphi 0, %s233
      %s251 = sphi 0, %s251
      %s253 = sphi 0, %s251
      %s254 = sphi 0, %s253
      %s268 = sphi 0, %s254
    $region4: #{tpu_custom_call.1} parent=1 // loop_header_branch
      %22 = sbr.rel (%p20) target = $region8
    $region5: #{tpu_custom_call.1} parent=1 // loop_body
      %s24 = ssub.s32 %s19, 1
      %s25 = ssub.s32 %s19, 2
      %s35 = sadd.s32 1, %s28
      %p36 = scmp.ge.s32.totalorder %s35, 1
      %s37 = scalar_select %p36, 0, %s35
      %s38 = sadd.s32 1, %s27
      %s39 = scalar_select %p36, %s38, %s27
      %p40 = scmp.ge.s32.totalorder %s39, 1
      %s41 = scalar_select %p40, 0, %s39
      %s42 = sadd.s32 1, %s26
      %s43 = scalar_select %p40, %s42, %s26
      %p44 = scmp.ge.s32.totalorder %s43, 3
      %s45 = scalar_select %p44, 0, %s43
      %s46 = ssub.s32 %s27, %s41
      %s47 = ssub.s32 %s28, %s37
      %s48 = sor.u32 %s46, %s47
      %p49 = scmp.eq.s32.totalorder %s48, 0
      %s51 = sadd.s32 %s50, 1
      %s52 = scalar_select %p49, %s50, %s51
      %p55 = pneg %p49
      %p56 = scmp.eq.s32.totalorder %s19, 2
      %p57 = por %p55, %p56
      %p58 = scmp.ne.s32.totalorder %s50, %s53
      %p59 = scmp.eq.s32.totalorder %s19, 0
      %p60 = por %p58, %p59
      %p61 = scmp.ne.s32.totalorder %s50, %s53
      %p62 = scmp.eq.s32.totalorder %s24, 2
      %p63 = por %p61, %p62
      %p64 = scmp.ne.s32.totalorder %s53, %s54
      %p65 = scmp.eq.s32.totalorder %s24, 0
      %p66 = por %p64, %p65
      %p67 = scmp.ne.s32.totalorder %s53, %s54
      %p68 = scmp.eq.s32.totalorder %s25, 2
      %p69 = por %p67, %p68
      %p71 = scmp.ne.s32.totalorder %s54, %s70
      %p72 = scmp.eq.s32.totalorder %s25, 0
      %p73 = por %p71, %p72
      %s75 = sadd.s32 %s74, 1
      %p78 = scmp.eq.s32.totalorder %s19, 2
      %p79 = scmp.ne.s32.totalorder %s74, %s76
      %p80 = scmp.eq.s32.totalorder %s19, 0
      %p81 = por %p79, %p80
      %p82 = scmp.ne.s32.totalorder %s74, %s76
      %p83 = scmp.eq.s32.totalorder %s24, 2
      %p84 = por %p82, %p83
      %p85 = scmp.ne.s32.totalorder %s76, %s77
      %p86 = scmp.eq.s32.totalorder %s24, 0
      %p87 = por %p85, %p86
      %p88 = scmp.ne.s32.totalorder %s76, %s77
      %p89 = scmp.eq.s32.totalorder %s25, 2
      %p90 = por %p88, %p89
      %p92 = scmp.ne.s32.totalorder %s77, %s91
      %p93 = scmp.eq.s32.totalorder %s25, 0
      %p94 = por %p92, %p93
      %p95 = scmp.eq.s32.totalorder %s26, 2
      %s96 = scalar_select %p95, %s27, 0
      %p97 = scmp.eq.s32.totalorder %s45, 2
      %s98 = scalar_select %p97, %s41, 0
      %s99 = ssub.s32 %s96, %s98
      %p100 = scmp.eq.s32.totalorder %s99, 0
      %s102 = sadd.s32 %s101, 1
      %s103 = scalar_select %p100, %s101, %s102
      %p106 = pneg %p100
      %p107 = scmp.eq.s32.totalorder %s19, 2
      %p108 = por %p106, %p107
      %p109 = scmp.ne.s32.totalorder %s101, %s104
      %p110 = scmp.eq.s32.totalorder %s19, 0
      %p111 = por %p109, %p110
      %p112 = scmp.ne.s32.totalorder %s101, %s104
      %p113 = scmp.eq.s32.totalorder %s24, 2
      %p114 = por %p112, %p113
      %p115 = scmp.ne.s32.totalorder %s104, %s105
      %p116 = scmp.eq.s32.totalorder %s24, 0
      %p117 = por %p115, %p116
      %p118 = scmp.ne.s32.totalorder %s104, %s105
      %p119 = scmp.eq.s32.totalorder %s25, 2
      %p120 = por %p118, %p119
      %p122 = scmp.ne.s32.totalorder %s105, %s121
      %p123 = scmp.eq.s32.totalorder %s25, 0
      %p124 = por %p122, %p123
      %s126 = sadd.s32 %s125, 1
      %p129 = scmp.eq.s32.totalorder %s19, 2
      %p130 = scmp.ne.s32.totalorder %s125, %s127
      %p131 = scmp.eq.s32.totalorder %s19, 0
      %p132 = por %p130, %p131
      %p133 = scmp.ne.s32.totalorder %s125, %s127
      %p134 = scmp.eq.s32.totalorder %s24, 2
      %p135 = por %p133, %p134
      %p136 = scmp.ne.s32.totalorder %s127, %s128
      %p137 = scmp.eq.s32.totalorder %s24, 0
      %p138 = por %p136, %p137
      %p139 = scmp.ne.s32.totalorder %s127, %s128
      %p140 = scmp.eq.s32.totalorder %s25, 2
      %p141 = por %p139, %p140
      %p143 = scmp.ne.s32.totalorder %s128, %s142
      %p144 = scmp.eq.s32.totalorder %s25, 0
      %p145 = por %p143, %p144
      %s147 = sadd.s32 %s146, 1
      %p150 = scmp.eq.s32.totalorder %s19, 2
      %p151 = scmp.ne.s32.totalorder %s146, %s148
      %p152 = scmp.eq.s32.totalorder %s19, 0
      %p153 = por %p151, %p152
      %p154 = scmp.ne.s32.totalorder %s146, %s148
      %p155 = scmp.eq.s32.totalorder %s24, 2
      %p156 = por %p154, %p155
      %p157 = scmp.ne.s32.totalorder %s148, %s149
      %p158 = scmp.eq.s32.totalorder %s24, 0
      %p159 = por %p157, %p158
      %p160 = scmp.ne.s32.totalorder %s148, %s149
      %p161 = scmp.eq.s32.totalorder %s25, 2
      %p162 = por %p160, %p161
      %p164 = scmp.ne.s32.totalorder %s149, %s163
      %p165 = scmp.eq.s32.totalorder %s25, 0
      %p166 = por %p164, %p165
      %s168 = sadd.s32 %s167, 1
      %p171 = scmp.eq.s32.totalorder %s19, 2
      %p172 = scmp.ne.s32.totalorder %s167, %s169
      %p173 = scmp.eq.s32.totalorder %s19, 0
      %p174 = por %p172, %p173
      %p175 = scmp.ne.s32.totalorder %s167, %s169
      %p176 = scmp.eq.s32.totalorder %s24, 2
      %p177 = por %p175, %p176
      %p178 = scmp.ne.s32.totalorder %s169, %s170
      %p179 = scmp.eq.s32.totalorder %s24, 0
      %p180 = por %p178, %p179
      %p181 = scmp.ne.s32.totalorder %s169, %s170
      %p182 = scmp.eq.s32.totalorder %s25, 2
      %p183 = por %p181, %p182
      %p185 = scmp.ne.s32.totalorder %s170, %s184
      %p186 = scmp.eq.s32.totalorder %s25, 0
      %p187 = por %p185, %p186
      %s189 = sadd.s32 %s188, 1
      %p192 = scmp.eq.s32.totalorder %s19, 2
      %p193 = scmp.ne.s32.totalorder %s188, %s190
      %p194 = scmp.eq.s32.totalorder %s19, 0
      %p195 = por %p193, %p194
      %p196 = scmp.ne.s32.totalorder %s188, %s190
      %p197 = scmp.eq.s32.totalorder %s24, 2
      %p198 = por %p196, %p197
      %p199 = scmp.ne.s32.totalorder %s190, %s191
      %p200 = scmp.eq.s32.totalorder %s24, 0
      %p201 = por %p199, %p200
      %p202 = scmp.ne.s32.totalorder %s190, %s191
      %p203 = scmp.eq.s32.totalorder %s25, 2
      %p204 = por %p202, %p203
      %p206 = scmp.ne.s32.totalorder %s191, %s205
      %p207 = scmp.eq.s32.totalorder %s25, 0
      %p208 = por %p206, %p207
      %s210 = sadd.s32 %s209, 1
      %p213 = scmp.eq.s32.totalorder %s19, 2
      %p214 = scmp.ne.s32.totalorder %s209, %s211
      %p215 = scmp.eq.s32.totalorder %s19, 0
      %p216 = por %p214, %p215
      %p217 = scmp.ne.s32.totalorder %s209, %s211
      %p218 = scmp.eq.s32.totalorder %s24, 2
      %p219 = por %p217, %p218
      %p220 = scmp.ne.s32.totalorder %s211, %s212
      %p221 = scmp.eq.s32.totalorder %s24, 0
      %p222 = por %p220, %p221
      %p223 = scmp.ne.s32.totalorder %s211, %s212
      %p224 = scmp.eq.s32.totalorder %s25, 2
      %p225 = por %p223, %p224
      %p227 = scmp.ne.s32.totalorder %s212, %s226
      %p228 = scmp.eq.s32.totalorder %s25, 0
      %p229 = por %p227, %p228
      %s231 = sadd.s32 %s230, 1
      %p234 = scmp.eq.s32.totalorder %s19, 2
      %p235 = scmp.ne.s32.totalorder %s230, %s232
      %p236 = scmp.eq.s32.totalorder %s19, 0
      %p237 = por %p235, %p236
      %p238 = scmp.ne.s32.totalorder %s230, %s232
      %p239 = scmp.eq.s32.totalorder %s24, 2
      %p240 = por %p238, %p239
      %p241 = scmp.ne.s32.totalorder %s232, %s233
      %p242 = scmp.eq.s32.totalorder %s24, 0
      %p243 = por %p241, %p242
      %p244 = scmp.ne.s32.totalorder %s232, %s233
      %p245 = scmp.eq.s32.totalorder %s25, 2
      %p246 = por %p244, %p245
      %p248 = scmp.ne.s32.totalorder %s233, %s247
      %p249 = scmp.eq.s32.totalorder %s25, 0
      %p250 = por %p248, %p249
      %s252 = sadd.s32 %s251, 1
      %p255 = scmp.eq.s32.totalorder %s19, 2
      %p256 = scmp.ne.s32.totalorder %s251, %s253
      %p257 = scmp.eq.s32.totalorder %s19, 0
      %p258 = por %p256, %p257
      %p259 = scmp.ne.s32.totalorder %s251, %s253
      %p260 = scmp.eq.s32.totalorder %s24, 2
      %p261 = por %p259, %p260
      %p262 = scmp.ne.s32.totalorder %s253, %s254
      %p263 = scmp.eq.s32.totalorder %s24, 0
      %p264 = por %p262, %p263
      %p265 = scmp.ne.s32.totalorder %s253, %s254
      %p266 = scmp.eq.s32.totalorder %s25, 2
      %p267 = por %p265, %p266
      %p269 = scmp.ne.s32.totalorder %s254, %s268
      %p270 = scmp.eq.s32.totalorder %s25, 0
      %p271 = por %p269, %p270
      %p272 = scmp.le.s32.totalorder 1, %s19
      %p273 = scmp.lt.s32.totalorder %s19, 4
      %p274 = pnand %p272, %p273
      %p275 = pneg %p274
      // Predicated region
      $region9: #{tpu_custom_call.1} parent=5 // pred_check
        _
      $region10: #{tpu_custom_call.1} parent=5 // pred_check_branch
        %277 = sbr.rel (%p274) target = $region12
      $region11: #{tpu_custom_call.1} parent=5 // pred_region
        %s278 = ssub.s32 %s19, 1
        // Predicated region
        $region13: #{tpu_custom_call.1} parent=11 // pred_check
          %p279 = pneg %p66
        $region14: #{tpu_custom_call.1} parent=11 // pred_check_branch
          %281 = sbr.rel (%p279) target = $region16
        $region15: #{tpu_custom_call.1} parent=11 // pred_region
          %s282 = smul.u32 16, %s30
          %284 = vsyncadd [#allocation7], 0
          %s285 = sadd.s32 %s31, %s282
          %s286 = smul.addr %s285, 4
          %s287 = scalar_lea.hbm %s0, %s286
          %s288 = sshll.u32 %s287, 4
          %s289 = int_to_ptr.hbm [resolvable:$true] %s288
          %s290 = sshll.u32 [#allocation6], 4
          %s291 = int_to_ptr.vmem [resolvable:$true] %s290
          %296 = dma.hbm_to_vmem [thread:$0]  %s289, 1024, %s291, [#allocation7], 64, 64, 4
        $region16: #{tpu_custom_call.1} parent=11 // pred_fallthru
          _
        // Predicated region
        $region17: #{tpu_custom_call.1} parent=11 // pred_check
          %p297 = pneg %p87
        $region18: #{tpu_custom_call.1} parent=11 // pred_check_branch
          %299 = sbr.rel (%p297) target = $region20
        $region19: #{tpu_custom_call.1} parent=11 // pred_region
          %301 = vsyncadd [#allocation10], 0
          %s302 = sshll.u32 %s1, 4
          %s303 = int_to_ptr.hbm [resolvable:$true] %s302
          %s304 = sshll.u32 [#allocation9], 4
          %s305 = int_to_ptr.vmem [resolvable:$true] %s304
          %310 = dma.hbm_to_vmem [thread:$0]  %s303, 1024, %s305, [#allocation10], 64, 64, 4
        $region20: #{tpu_custom_call.1} parent=11 // pred_fallthru
          _
        // Predicated region
        $region21: #{tpu_custom_call.1} parent=11 // pred_check
          %p311 = pneg %p138
        $region22: #{tpu_custom_call.1} parent=11 // pred_check_branch
          %313 = sbr.rel (%p311) target = $region24
        $region23: #{tpu_custom_call.1} parent=11 // pred_region
          %315 = vsyncadd [#allocation10], 0
          %s316 = sshll.u32 %s3, 4
          %s317 = int_to_ptr.hbm [resolvable:$true] %s316
          %s318 = sshll.u32 [#allocation12], 4
          %s319 = int_to_ptr.vmem [resolvable:$true] %s318
          %324 = dma.hbm_to_vmem [thread:$0]  %s317, 3072, %s319, [#allocation10], 64, 64, 4
        $region24: #{tpu_custom_call.1} parent=11 // pred_fallthru
          _
        // Predicated region
        $region25: #{tpu_custom_call.1} parent=11 // pred_check
          %p325 = pneg %p159
        $region26: #{tpu_custom_call.1} parent=11 // pred_check_branch
          %327 = sbr.rel (%p325) target = $region28
        $region27: #{tpu_custom_call.1} parent=11 // pred_region
          _
        $region28: #{tpu_custom_call.1} parent=11 // pred_fallthru
          _
        // Predicated region
        $region29: #{tpu_custom_call.1} parent=11 // pred_check
          %p328 = pneg %p180
        $region30: #{tpu_custom_call.1} parent=11 // pred_check_branch
          %330 = sbr.rel (%p328) target = $region32
        $region31: #{tpu_custom_call.1} parent=11 // pred_region
          %332 = vsyncadd [#allocation14], 0
          %s333 = sshll.u32 %s5, 4
          %s334 = int_to_ptr.hbm [resolvable:$true] %s333
          %s335 = sshll.u32 [#allocation13], 4
          %s336 = int_to_ptr.vmem [resolvable:$true] %s335
          %341 = dma.hbm_to_vmem [thread:$0]  %s334, 1024, %s336, [#allocation14], 64, 64, 4
        $region32: #{tpu_custom_call.1} parent=11 // pred_fallthru
          _
        // Predicated region
        $region33: #{tpu_custom_call.1} parent=11 // pred_check
          %p342 = pneg %p201
        $region34: #{tpu_custom_call.1} parent=11 // pred_check_branch
          %344 = sbr.rel (%p342) target = $region36
        $region35: #{tpu_custom_call.1} parent=11 // pred_region
          _
        $region36: #{tpu_custom_call.1} parent=11 // pred_fallthru
          _
        // Predicated region
        $region37: #{tpu_custom_call.1} parent=11 // pred_check
          %p345 = pneg %p222
        $region38: #{tpu_custom_call.1} parent=11 // pred_check_branch
          %347 = sbr.rel (%p345) target = $region40
        $region39: #{tpu_custom_call.1} parent=11 // pred_region
          %349 = vsyncadd [#allocation14], 0
          %s350 = sshll.u32 %s7, 4
          %s351 = int_to_ptr.hbm [resolvable:$true] %s350
          %s352 = sshll.u32 [#allocation15], 4
          %s353 = int_to_ptr.vmem [resolvable:$true] %s352
          %358 = dma.hbm_to_vmem [thread:$0]  %s351, 1024, %s353, [#allocation14], 64, 64, 4
        $region40: #{tpu_custom_call.1} parent=11 // pred_fallthru
          _
        // Predicated region
        $region41: #{tpu_custom_call.1} parent=11 // pred_check
          %p359 = pneg %p243
        $region42: #{tpu_custom_call.1} parent=11 // pred_check_branch
          %361 = sbr.rel (%p359) target = $region44
        $region43: #{tpu_custom_call.1} parent=11 // pred_region
          _
        $region44: #{tpu_custom_call.1} parent=11 // pred_fallthru
          _
      $region12: #{tpu_custom_call.1} parent=5 // pred_fallthru
        _
      %p362 = scmp.lt.s32.totalorder %s19, 3
      // Predicated region
      $region45: #{tpu_custom_call.1} parent=5 // pred_check
        %p363 = pneg %p362
      $region46: #{tpu_custom_call.1} parent=5 // pred_check_branch
        %365 = sbr.rel (%p363) target = $region48
      $region47: #{tpu_custom_call.1} parent=5 // pred_region
        // Predicated region
        $region49: #{tpu_custom_call.1} parent=47 // pred_check
          %p366 = pneg %p111
        $region50: #{tpu_custom_call.1} parent=47 // pred_check_branch
          %368 = sbr.rel (%p366) target = $region52
        $region51: #{tpu_custom_call.1} parent=47 // pred_region
          %s369 = sand.u32 %s19, 1
          %s370 = scalar_lea.sflag [#allocation7], %s369
          %s371 = sand.u32 %s101, 1
          %s372 = smul.addr %s371, 4
          %s373 = scalar_lea.vmem [#allocation11], %s372
          %p374 = scmp.eq.s32.totalorder %s26, 2
          %s375 = scalar_select %p374, %s27, 0
          %377 = vsyncadd %s370, 0
          %s378 = smul.addr %s375, 4
          %s379 = scalar_lea.hbm %s2, %s378
          %s381 = sshll.u32 %s379, 4
          %s382 = int_to_ptr.hbm [resolvable:$true] %s381
          %s383 = sshll.u32 %s373, 4
          %s384 = int_to_ptr.vmem [resolvable:$true] %s383
          %386 = dma.hbm_to_vmem [thread:$0]  %s382, 64, %s384, %s370
        $region52: #{tpu_custom_call.1} parent=47 // pred_fallthru
          _
      $region48: #{tpu_custom_call.1} parent=5 // pred_fallthru
        _
      %p387 = scmp.le.s32.totalorder 1, %s19
      %p388 = scmp.lt.s32.totalorder %s19, 4
      %p389 = pnand %p387, %p388
      %p390 = pneg %p389
      // Predicated region
      $region53: #{tpu_custom_call.1} parent=5 // pred_check
        _
      $region54: #{tpu_custom_call.1} parent=5 // pred_check_branch
        %392 = sbr.rel (%p389) target = $region56
      $region55: #{tpu_custom_call.1} parent=5 // pred_region
        %s393 = ssub.s32 %s19, 1
        // Predicated region
        $region57: #{tpu_custom_call.1} parent=55 // pred_check
          %p394 = pneg %p66
        $region58: #{tpu_custom_call.1} parent=55 // pred_check_branch
          %396 = sbr.rel (%p394) target = $region60
        $region59: #{tpu_custom_call.1} parent=55 // pred_region
          %398 = dma.done [#allocation7], 1024
        $region60: #{tpu_custom_call.1} parent=55 // pred_fallthru
          _
        // Predicated region
        $region61: #{tpu_custom_call.1} parent=55 // pred_check
          %p399 = pneg %p87
        $region62: #{tpu_custom_call.1} parent=55 // pred_check_branch
          %401 = sbr.rel (%p399) target = $region64
        $region63: #{tpu_custom_call.1} parent=55 // pred_region
          %403 = dma.done [#allocation10], 1024
        $region64: #{tpu_custom_call.1} parent=55 // pred_fallthru
          _
        %s404 = sand.u32 %s24, 1
        %s405 = scalar_lea.sflag [#allocation7], %s404
        %s406 = sand.u32 %s104, 1
        %s407 = smul.addr %s406, 4
        %s408 = scalar_lea.vmem [#allocation11], %s407
        // Predicated region
        $region65: #{tpu_custom_call.1} parent=55 // pred_check
          %p409 = pneg %p117
        $region66: #{tpu_custom_call.1} parent=55 // pred_check_branch
          %411 = sbr.rel (%p409) target = $region68
        $region67: #{tpu_custom_call.1} parent=55 // pred_region
          %413 = dma.done %s405, 64
        $region68: #{tpu_custom_call.1} parent=55 // pred_fallthru
          _
        // Predicated region
        $region69: #{tpu_custom_call.1} parent=55 // pred_check
          %p414 = pneg %p138
        $region70: #{tpu_custom_call.1} parent=55 // pred_check_branch
          %416 = sbr.rel (%p414) target = $region72
        $region71: #{tpu_custom_call.1} parent=55 // pred_region
          %418 = dma.done [#allocation10], 3072
        $region72: #{tpu_custom_call.1} parent=55 // pred_fallthru
          _
        // Predicated region
        $region73: #{tpu_custom_call.1} parent=55 // pred_check
          %p419 = pneg %p180
        $region74: #{tpu_custom_call.1} parent=55 // pred_check_branch
          %421 = sbr.rel (%p419) target = $region76
        $region75: #{tpu_custom_call.1} parent=55 // pred_region
          %423 = dma.done [#allocation14], 1024
        $region76: #{tpu_custom_call.1} parent=55 // pred_fallthru
          _
        // Predicated region
        $region77: #{tpu_custom_call.1} parent=55 // pred_check
          %p424 = pneg %p222
        $region78: #{tpu_custom_call.1} parent=55 // pred_check_branch
          %426 = sbr.rel (%p424) target = $region80
        $region79: #{tpu_custom_call.1} parent=55 // pred_region
          %428 = dma.done [#allocation14], 1024
        $region80: #{tpu_custom_call.1} parent=55 // pred_fallthru
          _
        %p429 = pneg %p66
        %p430 = pneg %p63
        %p431 = pneg %p87
        %p432 = pneg %p84
        %s433 = sand.u32 %s24, 1
        %s434 = scalar_lea.sflag [#allocation7], %s433
        %s435 = sand.u32 %s104, 1
        %s436 = smul.addr %s435, 4
        %s437 = scalar_lea.vmem [#allocation11], %s436
        %p438 = pneg %p117
        %p439 = pneg %p114
        %p440 = pneg %p138
        %p441 = pneg %p135
        %p442 = pneg %p159
        %p443 = pneg %p156
        %p444 = pneg %p180
        %p445 = pneg %p177
        %p446 = pneg %p201
        %p447 = pneg %p198
        %p448 = pneg %p222
        %p449 = pneg %p219
        %p450 = pneg %p243
        %p451 = pneg %p240
        %p452 = pneg %p264
        %p453 = pneg %p261
        %s454 = smul.u32 16, %s30
        %p455 = scmp.eq.s32.totalorder %s29, 2
        %s456 = scalar_select %p455, %s30, 0
        %p457 = scmp.eq.s32.totalorder %s29, 0
        %p458 = scmp.eq.s32.totalorder %s30, 0
        %p459 = pnand %p457, %p458
        %p460 = pneg %p459
        %p461 = scmp.eq.s32.totalorder %s31, 0
        %p462 = pnand %p460, %p461
        %p463 = pneg %p462
        // Predicated region
        $region81: #{tpu_custom_call.1} parent=55 // pred_check
          _
        $region82: #{tpu_custom_call.1} parent=55 // pred_check_branch
          %465 = sbr.rel (%p462) target = $region84
        $region83: #{tpu_custom_call.1} parent=55 // pred_region
          %v466 = vld [vmem:[#allocation9] sm:$0xf]
          %v467 = vld [vmem:[#allocation9 + $0x4] sm:$0xf]
          %v468 = vld [vmem:[#allocation9 + $0x8] sm:$0xf]
          %v469 = vld [vmem:[#allocation9 + $0xc] sm:$0xf]
          %v470 = vld [vmem:[#allocation9 + $0x10] sm:$0xf]
          %v471 = vld [vmem:[#allocation9 + $0x14] sm:$0xf]
          %v472 = vld [vmem:[#allocation9 + $0x18] sm:$0xf]
          %v473 = vld [vmem:[#allocation9 + $0x1c] sm:$0xf]
          %v474 = vld [vmem:[#allocation9 + $0x20] sm:$0xf]
          %v475 = vld [vmem:[#allocation9 + $0x24] sm:$0xf]
          %v476 = vld [vmem:[#allocation9 + $0x28] sm:$0xf]
          %v477 = vld [vmem:[#allocation9 + $0x2c] sm:$0xf]
          %v478 = vld [vmem:[#allocation9 + $0x30] sm:$0xf]
          %v479 = vld [vmem:[#allocation9 + $0x34] sm:$0xf]
          %v480 = vld [vmem:[#allocation9 + $0x38] sm:$0xf]
          %v481 = vld [vmem:[#allocation9 + $0x3c] sm:$0xf]
          %482 = vst [vmem:[#allocation2] sm:$0xf] %v466
          %483 = vst [vmem:[#allocation2 + $0x4] sm:$0xf] %v467
          %484 = vst [vmem:[#allocation2 + $0x8] sm:$0xf] %v468
          %485 = vst [vmem:[#allocation2 + $0xc] sm:$0xf] %v469
          %486 = vst [vmem:[#allocation2 + $0x10] sm:$0xf] %v470
          %487 = vst [vmem:[#allocation2 + $0x14] sm:$0xf] %v471
          %488 = vst [vmem:[#allocation2 + $0x18] sm:$0xf] %v472
          %489 = vst [vmem:[#allocation2 + $0x1c] sm:$0xf] %v473
          %490 = vst [vmem:[#allocation2 + $0x20] sm:$0xf] %v474
          %491 = vst [vmem:[#allocation2 + $0x24] sm:$0xf] %v475
          %492 = vst [vmem:[#allocation2 + $0x28] sm:$0xf] %v476
          %493 = vst [vmem:[#allocation2 + $0x2c] sm:$0xf] %v477
          %494 = vst [vmem:[#allocation2 + $0x30] sm:$0xf] %v478
          %495 = vst [vmem:[#allocation2 + $0x34] sm:$0xf] %v479
          %496 = vst [vmem:[#allocation2 + $0x38] sm:$0xf] %v480
          %497 = vst [vmem:[#allocation2 + $0x3c] sm:$0xf] %v481
          %498 = vst [vmem:[#allocation5] sm:$0xff] 0.0
        $region84: #{tpu_custom_call.1} parent=55 // pred_fallthru
          _
        %p499 = pnand %p458, %p461
        %p500 = pneg %p499
        // Predicated region
        $region85: #{tpu_custom_call.1} parent=55 // pred_check
          _
        $region86: #{tpu_custom_call.1} parent=55 // pred_check_branch
          %502 = sbr.rel (%p499) target = $region88
        $region87: #{tpu_custom_call.1} parent=55 // pred_region
          %v503 = vld [vmem:[#allocation2] sm:$0xf]
          %v504 = vld [vmem:[#allocation2 + $0x4] sm:$0xf]
          %v505 = vld [vmem:[#allocation2 + $0x8] sm:$0xf]
          %v506 = vld [vmem:[#allocation2 + $0xc] sm:$0xf]
          %v507 = vld [vmem:[#allocation2 + $0x10] sm:$0xf]
          %v508 = vld [vmem:[#allocation2 + $0x14] sm:$0xf]
          %v509 = vld [vmem:[#allocation2 + $0x18] sm:$0xf]
          %v510 = vld [vmem:[#allocation2 + $0x1c] sm:$0xf]
          %v511 = vld [vmem:[#allocation2 + $0x20] sm:$0xf]
          %v512 = vld [vmem:[#allocation2 + $0x24] sm:$0xf]
          %v513 = vld [vmem:[#allocation2 + $0x28] sm:$0xf]
          %v514 = vld [vmem:[#allocation2 + $0x2c] sm:$0xf]
          %v515 = vld [vmem:[#allocation2 + $0x30] sm:$0xf]
          %v516 = vld [vmem:[#allocation2 + $0x34] sm:$0xf]
          %v517 = vld [vmem:[#allocation2 + $0x38] sm:$0xf]
          %v518 = vld [vmem:[#allocation2 + $0x3c] sm:$0xf]
          %s519 = smul.u32 %s29, 16
          %s520 = smul.addr %s519, 4
          %s521 = scalar_lea.vmem [#allocation12], %s520
          %v522 = vld [vmem:[%s521] sm:$0xf]
          %v523 = vld [vmem:[%s521 + $0x4] sm:$0xf]
          %v524 = vld [vmem:[%s521 + $0x8] sm:$0xf]
          %v525 = vld [vmem:[%s521 + $0xc] sm:$0xf]
          %v526 = vld [vmem:[%s521 + $0x10] sm:$0xf]
          %v527 = vld [vmem:[%s521 + $0x14] sm:$0xf]
          %v528 = vld [vmem:[%s521 + $0x18] sm:$0xf]
          %v529 = vld [vmem:[%s521 + $0x1c] sm:$0xf]
          %v530 = vld [vmem:[%s521 + $0x20] sm:$0xf]
          %v531 = vld [vmem:[%s521 + $0x24] sm:$0xf]
          %v532 = vld [vmem:[%s521 + $0x28] sm:$0xf]
          %v533 = vld [vmem:[%s521 + $0x2c] sm:$0xf]
          %v534 = vld [vmem:[%s521 + $0x30] sm:$0xf]
          %v535 = vld [vmem:[%s521 + $0x34] sm:$0xf]
          %v536 = vld [vmem:[%s521 + $0x38] sm:$0xf]
          %v537 = vld [vmem:[%s521 + $0x3c] sm:$0xf]
          %v554 = vunpack.c.l.b16 %v503
          %v555 = vunpack.c.l.b16 %v504
          %v556 = vunpack.c.l.b16 %v505
          %v557 = vunpack.c.l.b16 %v506
          %v558 = vunpack.c.l.b16 %v507
          %v559 = vunpack.c.l.b16 %v508
          %v560 = vunpack.c.l.b16 %v509
          %v561 = vunpack.c.l.b16 %v510
          %v562 = vunpack.c.l.b16 %v511
          %v563 = vunpack.c.l.b16 %v512
          %v564 = vunpack.c.l.b16 %v513
          %v565 = vunpack.c.l.b16 %v514
          %v566 = vunpack.c.l.b16 %v515
          %v567 = vunpack.c.l.b16 %v516
          %v568 = vunpack.c.l.b16 %v517
          %v569 = vunpack.c.l.b16 %v518
          %v570 = vpack.c.b16 %v555, %v554
          %v571 = vpack.c.b16 %v557, %v556
          %v572 = vpack.c.b16 %v559, %v558
          %v573 = vpack.c.b16 %v561, %v560
          %v574 = vpack.c.b16 %v563, %v562
          %v575 = vpack.c.b16 %v565, %v564
          %v576 = vpack.c.b16 %v567, %v566
          %v577 = vpack.c.b16 %v569, %v568
          %v602 = vunpack.c.l.b16 %v522
          %v603 = vunpack.c.l.b16 %v523
          %v604 = vunpack.c.l.b16 %v524
          %v605 = vunpack.c.l.b16 %v525
          %v606 = vunpack.c.l.b16 %v526
          %v607 = vunpack.c.l.b16 %v527
          %v608 = vunpack.c.l.b16 %v528
          %v609 = vunpack.c.l.b16 %v529
          %v610 = vunpack.c.l.b16 %v530
          %v611 = vunpack.c.l.b16 %v531
          %v612 = vunpack.c.l.b16 %v532
          %v613 = vunpack.c.l.b16 %v533
          %v614 = vunpack.c.l.b16 %v534
          %v615 = vunpack.c.l.b16 %v535
          %v616 = vunpack.c.l.b16 %v536
          %v617 = vunpack.c.l.b16 %v537
          %v618 = vpack.c.b16 %v603, %v602
          %v619 = vpack.c.b16 %v605, %v604
          %v620 = vpack.c.b16 %v607, %v606
          %v621 = vpack.c.b16 %v609, %v608
          %v622 = vpack.c.b16 %v611, %v610
          %v623 = vpack.c.b16 %v613, %v612
          %v624 = vpack.c.b16 %v615, %v614
          %v625 = vpack.c.b16 %v617, %v616
          %634 = vmatpush.bf16.msra.mxu0 %v625
          %635 = vmatpush.bf16.msra.mxu0 %v624
          %636 = vmatpush.bf16.msra.mxu0 %v623
          %637 = vmatpush.bf16.msra.mxu0 %v622
          %638 = vmatpush.bf16.msra.mxu0 %v621
          %639 = vmatpush.bf16.msra.mxu0 %v620
          %640 = vmatpush.bf16.msra.mxu0 %v619
          %641 = vmatpush.bf16.msra.mxu0 %v618
          %642 = vmatmul.bf16.gmra.mxu0 %v570
          %v643 = vpop.f32.mrf.mxu0
          %v644 = vadd.f32 0.0, %v643
          %v645 = vpop.f32.mrf.mxu0
          %v646 = vadd.f32 0.0, %v645
          %647 = vmatmul.bf16.gmra.mxu0 %v571
          %v648 = vpop.f32.mrf.mxu0
          %v649 = vadd.f32 0.0, %v648
          %v650 = vpop.f32.mrf.mxu0
          %v651 = vadd.f32 0.0, %v650
          %652 = vmatmul.bf16.gmra.mxu0 %v572
          %v653 = vpop.f32.mrf.mxu0
          %v654 = vadd.f32 0.0, %v653
          %v655 = vpop.f32.mrf.mxu0
          %v656 = vadd.f32 0.0, %v655
          %657 = vmatmul.bf16.gmra.mxu0 %v573
          %v658 = vpop.f32.mrf.mxu0
          %v659 = vadd.f32 0.0, %v658
          %v660 = vpop.f32.mrf.mxu0
          %v661 = vadd.f32 0.0, %v660
          %662 = vmatmul.bf16.gmra.mxu0 %v574
          %v663 = vpop.f32.mrf.mxu0
          %v664 = vadd.f32 0.0, %v663
          %v665 = vpop.f32.mrf.mxu0
          %v666 = vadd.f32 0.0, %v665
          %667 = vmatmul.bf16.gmra.mxu0 %v575
          %v668 = vpop.f32.mrf.mxu0
          %v669 = vadd.f32 0.0, %v668
          %v670 = vpop.f32.mrf.mxu0
          %v671 = vadd.f32 0.0, %v670
          %672 = vmatmul.bf16.gmra.mxu0 %v576
          %v673 = vpop.f32.mrf.mxu0
          %v674 = vadd.f32 0.0, %v673
          %v675 = vpop.f32.mrf.mxu0
          %v676 = vadd.f32 0.0, %v675
          %677 = vmatmul.bf16.gmra.mxu0 %v577
          %v678 = vpop.f32.mrf.mxu0
          %v679 = vadd.f32 0.0, %v678
          %v680 = vpop.f32.mrf.mxu0
          %v681 = vadd.f32 0.0, %v680
          %682 = vdwg.mxu0
          %v683 = vpack.c.bf16 %v644, %v644
          %v684 = vpack.c.bf16 %v646, %v646
          %v685 = vpack.c.bf16 %v649, %v649
          %v686 = vpack.c.bf16 %v651, %v651
          %v687 = vpack.c.bf16 %v654, %v654
          %v688 = vpack.c.bf16 %v656, %v656
          %v689 = vpack.c.bf16 %v659, %v659
          %v690 = vpack.c.bf16 %v661, %v661
          %v691 = vpack.c.bf16 %v664, %v664
          %v692 = vpack.c.bf16 %v666, %v666
          %v693 = vpack.c.bf16 %v669, %v669
          %v694 = vpack.c.bf16 %v671, %v671
          %v695 = vpack.c.bf16 %v674, %v674
          %v696 = vpack.c.bf16 %v676, %v676
          %v697 = vpack.c.bf16 %v679, %v679
          %v698 = vpack.c.bf16 %v681, %v681
          %699 = vst [vmem:[#allocation3] sm:$0xf] %v683
          %700 = vst [vmem:[#allocation3 + $0x4] sm:$0xf] %v684
          %701 = vst [vmem:[#allocation3 + $0x8] sm:$0xf] %v685
          %702 = vst [vmem:[#allocation3 + $0xc] sm:$0xf] %v686
          %703 = vst [vmem:[#allocation3 + $0x10] sm:$0xf] %v687
          %704 = vst [vmem:[#allocation3 + $0x14] sm:$0xf] %v688
          %705 = vst [vmem:[#allocation3 + $0x18] sm:$0xf] %v689
          %706 = vst [vmem:[#allocation3 + $0x1c] sm:$0xf] %v690
          %707 = vst [vmem:[#allocation3 + $0x20] sm:$0xf] %v691
          %708 = vst [vmem:[#allocation3 + $0x24] sm:$0xf] %v692
          %709 = vst [vmem:[#allocation3 + $0x28] sm:$0xf] %v693
          %710 = vst [vmem:[#allocation3 + $0x2c] sm:$0xf] %v694
          %711 = vst [vmem:[#allocation3 + $0x30] sm:$0xf] %v695
          %712 = vst [vmem:[#allocation3 + $0x34] sm:$0xf] %v696
          %713 = vst [vmem:[#allocation3 + $0x38] sm:$0xf] %v697
          %714 = vst [vmem:[#allocation3 + $0x3c] sm:$0xf] %v698
        $region88: #{tpu_custom_call.1} parent=55 // pred_fallthru
          _
        // Predicated region
        $region89: #{tpu_custom_call.1} parent=55 // pred_check
          %p715 = pneg %p461
        $region90: #{tpu_custom_call.1} parent=55 // pred_check_branch
          %717 = sbr.rel (%p715) target = $region92
        $region91: #{tpu_custom_call.1} parent=55 // pred_region
          %718 = vst [vmem:[#allocation4] sm:$0xff] 0.0
          %719 = vst [vmem:[#allocation4 + $0x8] sm:$0xff] 0.0
          %720 = vst [vmem:[#allocation4 + $0x10] sm:$0xff] 0.0
          %721 = vst [vmem:[#allocation4 + $0x18] sm:$0xff] 0.0
          %722 = vst [vmem:[#allocation4 + $0x20] sm:$0xff] 0.0
          %723 = vst [vmem:[#allocation4 + $0x28] sm:$0xff] 0.0
          %724 = vst [vmem:[#allocation4 + $0x30] sm:$0xff] 0.0
          %725 = vst [vmem:[#allocation4 + $0x38] sm:$0xff] 0.0
          %726 = vst [vmem:[#allocation4 + $0x40] sm:$0xff] 0.0
          %727 = vst [vmem:[#allocation4 + $0x48] sm:$0xff] 0.0
          %728 = vst [vmem:[#allocation4 + $0x50] sm:$0xff] 0.0
          %729 = vst [vmem:[#allocation4 + $0x58] sm:$0xff] 0.0
          %730 = vst [vmem:[#allocation4 + $0x60] sm:$0xff] 0.0
          %731 = vst [vmem:[#allocation4 + $0x68] sm:$0xff] 0.0
          %732 = vst [vmem:[#allocation4 + $0x70] sm:$0xff] 0.0
          %733 = vst [vmem:[#allocation4 + $0x78] sm:$0xff] 0.0
        $region92: #{tpu_custom_call.1} parent=55 // pred_fallthru
          _
        %s734 = smul.u32 %s31, 128
        %v735 = vld [vmem:[#allocation4] sm:$0xff]
        %v736 = vld [vmem:[#allocation4 + $0x8] sm:$0xff]
        %v737 = vld [vmem:[#allocation4 + $0x10] sm:$0xff]
        %v738 = vld [vmem:[#allocation4 + $0x18] sm:$0xff]
        %v739 = vld [vmem:[#allocation4 + $0x20] sm:$0xff]
        %v740 = vld [vmem:[#allocation4 + $0x28] sm:$0xff]
        %v741 = vld [vmem:[#allocation4 + $0x30] sm:$0xff]
        %v742 = vld [vmem:[#allocation4 + $0x38] sm:$0xff]
        %v743 = vld [vmem:[#allocation4 + $0x40] sm:$0xff]
        %v744 = vld [vmem:[#allocation4 + $0x48] sm:$0xff]
        %v745 = vld [vmem:[#allocation4 + $0x50] sm:$0xff]
        %v746 = vld [vmem:[#allocation4 + $0x58] sm:$0xff]
        %v747 = vld [vmem:[#allocation4 + $0x60] sm:$0xff]
        %v748 = vld [vmem:[#allocation4 + $0x68] sm:$0xff]
        %v749 = vld [vmem:[#allocation4 + $0x70] sm:$0xff]
        %v750 = vld [vmem:[#allocation4 + $0x78] sm:$0xff]
        %v751 = vld [vmem:[#allocation6] sm:$0xf]
        %v752 = vld [vmem:[#allocation6 + $0x4] sm:$0xf]
        %v753 = vld [vmem:[#allocation6 + $0x8] sm:$0xf]
        %v754 = vld [vmem:[#allocation6 + $0xc] sm:$0xf]
        %v755 = vld [vmem:[#allocation6 + $0x10] sm:$0xf]
        %v756 = vld [vmem:[#allocation6 + $0x14] sm:$0xf]
        %v757 = vld [vmem:[#allocation6 + $0x18] sm:$0xf]
        %v758 = vld [vmem:[#allocation6 + $0x1c] sm:$0xf]
        %v759 = vld [vmem:[#allocation6 + $0x20] sm:$0xf]
        %v760 = vld [vmem:[#allocation6 + $0x24] sm:$0xf]
        %v761 = vld [vmem:[#allocation6 + $0x28] sm:$0xf]
        %v762 = vld [vmem:[#allocation6 + $0x2c] sm:$0xf]
        %v763 = vld [vmem:[#allocation6 + $0x30] sm:$0xf]
        %v764 = vld [vmem:[#allocation6 + $0x34] sm:$0xf]
        %v765 = vld [vmem:[#allocation6 + $0x38] sm:$0xf]
        %v766 = vld [vmem:[#allocation6 + $0x3c] sm:$0xf]
        %s767 = sshra.s32 %s734, 3
        %s768 = sand.u32 %s734, 7
        %s769 = smul.addr %s767, 4
        %s770 = scalar_lea.vmem [#allocation3], %s769
        %v771 = vld [vmem:[%s770] sm:$0xf]
        %v772 = vld [vmem:[%s770 + $0x4] sm:$0xf]
        %v773 = vld [vmem:[%s770 + $0x8] sm:$0xf]
        %v774 = vld [vmem:[%s770 + $0xc] sm:$0xf]
        %v775 = vld [vmem:[%s770 + $0x10] sm:$0xf]
        %v776 = vld [vmem:[%s770 + $0x14] sm:$0xf]
        %v777 = vld [vmem:[%s770 + $0x18] sm:$0xf]
        %v778 = vld [vmem:[%s770 + $0x1c] sm:$0xf]
        %v779 = vld [vmem:[%s770 + $0x20] sm:$0xf]
        %v780 = vld [vmem:[%s770 + $0x24] sm:$0xf]
        %v781 = vld [vmem:[%s770 + $0x28] sm:$0xf]
        %v782 = vld [vmem:[%s770 + $0x2c] sm:$0xf]
        %v783 = vld [vmem:[%s770 + $0x30] sm:$0xf]
        %v784 = vld [vmem:[%s770 + $0x34] sm:$0xf]
        %v785 = vld [vmem:[%s770 + $0x38] sm:$0xf]
        %v786 = vld [vmem:[%s770 + $0x3c] sm:$0xf]
        %v803 = vunpack.c.l.b16 %v751
        %v804 = vunpack.c.l.b16 %v752
        %v805 = vunpack.c.l.b16 %v753
        %v806 = vunpack.c.l.b16 %v754
        %v807 = vunpack.c.l.b16 %v755
        %v808 = vunpack.c.l.b16 %v756
        %v809 = vunpack.c.l.b16 %v757
        %v810 = vunpack.c.l.b16 %v758
        %v811 = vunpack.c.l.b16 %v759
        %v812 = vunpack.c.l.b16 %v760
        %v813 = vunpack.c.l.b16 %v761
        %v814 = vunpack.c.l.b16 %v762
        %v815 = vunpack.c.l.b16 %v763
        %v816 = vunpack.c.l.b16 %v764
        %v817 = vunpack.c.l.b16 %v765
        %v818 = vunpack.c.l.b16 %v766
        %v819 = vpack.c.b16 %v804, %v803
        %v820 = vpack.c.b16 %v806, %v805
        %v821 = vpack.c.b16 %v808, %v807
        %v822 = vpack.c.b16 %v810, %v809
        %v823 = vpack.c.b16 %v812, %v811
        %v824 = vpack.c.b16 %v814, %v813
        %v825 = vpack.c.b16 %v816, %v815
        %v826 = vpack.c.b16 %v818, %v817
        %v851 = vunpack.c.l.b16 %v771
        %v852 = vunpack.c.l.b16 %v772
        %v853 = vunpack.c.l.b16 %v773
        %v854 = vunpack.c.l.b16 %v774
        %v855 = vunpack.c.l.b16 %v775
        %v856 = vunpack.c.l.b16 %v776
        %v857 = vunpack.c.l.b16 %v777
        %v858 = vunpack.c.l.b16 %v778
        %v859 = vunpack.c.l.b16 %v779
        %v860 = vunpack.c.l.b16 %v780
        %v861 = vunpack.c.l.b16 %v781
        %v862 = vunpack.c.l.b16 %v782
        %v863 = vunpack.c.l.b16 %v783
        %v864 = vunpack.c.l.b16 %v784
        %v865 = vunpack.c.l.b16 %v785
        %v866 = vunpack.c.l.b16 %v786
        %v867 = vpack.c.b16 %v852, %v851
        %v868 = vpack.c.b16 %v854, %v853
        %v869 = vpack.c.b16 %v856, %v855
        %v870 = vpack.c.b16 %v858, %v857
        %v871 = vpack.c.b16 %v860, %v859
        %v872 = vpack.c.b16 %v862, %v861
        %v873 = vpack.c.b16 %v864, %v863
        %v874 = vpack.c.b16 %v866, %v865
        %883 = vmatpush.bf16.msra.mxu0 %v874
        %884 = vmatpush.bf16.msra.mxu0 %v873
        %885 = vmatpush.bf16.msra.mxu0 %v872
        %886 = vmatpush.bf16.msra.mxu0 %v871
        %887 = vmatpush.bf16.msra.mxu0 %v870
        %888 = vmatpush.bf16.msra.mxu0 %v869
        %889 = vmatpush.bf16.msra.mxu0 %v868
        %890 = vmatpush.bf16.msra.mxu0 %v867
        %891 = vmatmul.bf16.gmra.mxu0 %v819
        %v892 = vpop.f32.mrf.mxu0
        %v893 = vadd.f32 0.0, %v892
        %v894 = vpop.f32.mrf.mxu0
        %v895 = vadd.f32 0.0, %v894
        %896 = vmatmul.bf16.gmra.mxu0 %v820
        %v897 = vpop.f32.mrf.mxu0
        %v898 = vadd.f32 0.0, %v897
        %v899 = vpop.f32.mrf.mxu0
        %v900 = vadd.f32 0.0, %v899
        %901 = vmatmul.bf16.gmra.mxu0 %v821
        %v902 = vpop.f32.mrf.mxu0
        %v903 = vadd.f32 0.0, %v902
        %v904 = vpop.f32.mrf.mxu0
        %v905 = vadd.f32 0.0, %v904
        %906 = vmatmul.bf16.gmra.mxu0 %v822
        %v907 = vpop.f32.mrf.mxu0
        %v908 = vadd.f32 0.0, %v907
        %v909 = vpop.f32.mrf.mxu0
        %v910 = vadd.f32 0.0, %v909
        %911 = vmatmul.bf16.gmra.mxu0 %v823
        %v912 = vpop.f32.mrf.mxu0
        %v913 = vadd.f32 0.0, %v912
        %v914 = vpop.f32.mrf.mxu0
        %v915 = vadd.f32 0.0, %v914
        %916 = vmatmul.bf16.gmra.mxu0 %v824
        %v917 = vpop.f32.mrf.mxu0
        %v918 = vadd.f32 0.0, %v917
        %v919 = vpop.f32.mrf.mxu0
        %v920 = vadd.f32 0.0, %v919
        %921 = vmatmul.bf16.gmra.mxu0 %v825
        %v922 = vpop.f32.mrf.mxu0
        %v923 = vadd.f32 0.0, %v922
        %v924 = vpop.f32.mrf.mxu0
        %v925 = vadd.f32 0.0, %v924
        %926 = vmatmul.bf16.gmra.mxu0 %v826
        %v927 = vpop.f32.mrf.mxu0
        %v928 = vadd.f32 0.0, %v927
        %v929 = vpop.f32.mrf.mxu0
        %v930 = vadd.f32 0.0, %v929
        %931 = vdwg.mxu0
        %v932 = vadd.f32 %v735, %v893
        %v933 = vadd.f32 %v736, %v895
        %v934 = vadd.f32 %v737, %v898
        %v935 = vadd.f32 %v738, %v900
        %v936 = vadd.f32 %v739, %v903
        %v937 = vadd.f32 %v740, %v905
        %v938 = vadd.f32 %v741, %v908
        %v939 = vadd.f32 %v742, %v910
        %v940 = vadd.f32 %v743, %v913
        %v941 = vadd.f32 %v744, %v915
        %v942 = vadd.f32 %v745, %v918
        %v943 = vadd.f32 %v746, %v920
        %v944 = vadd.f32 %v747, %v923
        %v945 = vadd.f32 %v748, %v925
        %v946 = vadd.f32 %v749, %v928
        %v947 = vadd.f32 %v750, %v930
        %948 = vst [vmem:[#allocation4] sm:$0xff] %v932
        %949 = vst [vmem:[#allocation4 + $0x8] sm:$0xff] %v933
        %950 = vst [vmem:[#allocation4 + $0x10] sm:$0xff] %v934
        %951 = vst [vmem:[#allocation4 + $0x18] sm:$0xff] %v935
        %952 = vst [vmem:[#allocation4 + $0x20] sm:$0xff] %v936
        %953 = vst [vmem:[#allocation4 + $0x28] sm:$0xff] %v937
        %954 = vst [vmem:[#allocation4 + $0x30] sm:$0xff] %v938
        %955 = vst [vmem:[#allocation4 + $0x38] sm:$0xff] %v939
        %956 = vst [vmem:[#allocation4 + $0x40] sm:$0xff] %v940
        %957 = vst [vmem:[#allocation4 + $0x48] sm:$0xff] %v941
        %958 = vst [vmem:[#allocation4 + $0x50] sm:$0xff] %v942
        %959 = vst [vmem:[#allocation4 + $0x58] sm:$0xff] %v943
        %960 = vst [vmem:[#allocation4 + $0x60] sm:$0xff] %v944
        %961 = vst [vmem:[#allocation4 + $0x68] sm:$0xff] %v945
        %962 = vst [vmem:[#allocation4 + $0x70] sm:$0xff] %v946
        %963 = vst [vmem:[#allocation4 + $0x78] sm:$0xff] %v947
        // Predicated region
        $region93: #{tpu_custom_call.1} parent=55 // pred_check
          %p964 = pneg %p461
        $region94: #{tpu_custom_call.1} parent=55 // pred_check_branch
          %966 = sbr.rel (%p964) target = $region96
        $region95: #{tpu_custom_call.1} parent=55 // pred_region
          %s967 = smul.u32 %s30, 128
          %v968 = vld [vmem:[#allocation4] sm:$0xff]
          %v969 = vld [vmem:[#allocation4 + $0x8] sm:$0xff]
          %v970 = vld [vmem:[#allocation4 + $0x10] sm:$0xff]
          %v971 = vld [vmem:[#allocation4 + $0x18] sm:$0xff]
          %v972 = vld [vmem:[#allocation4 + $0x20] sm:$0xff]
          %v973 = vld [vmem:[#allocation4 + $0x28] sm:$0xff]
          %v974 = vld [vmem:[#allocation4 + $0x30] sm:$0xff]
          %v975 = vld [vmem:[#allocation4 + $0x38] sm:$0xff]
          %v976 = vld [vmem:[#allocation4 + $0x40] sm:$0xff]
          %v977 = vld [vmem:[#allocation4 + $0x48] sm:$0xff]
          %v978 = vld [vmem:[#allocation4 + $0x50] sm:$0xff]
          %v979 = vld [vmem:[#allocation4 + $0x58] sm:$0xff]
          %v980 = vld [vmem:[#allocation4 + $0x60] sm:$0xff]
          %v981 = vld [vmem:[#allocation4 + $0x68] sm:$0xff]
          %v982 = vld [vmem:[#allocation4 + $0x70] sm:$0xff]
          %v983 = vld [vmem:[#allocation4 + $0x78] sm:$0xff]
          %s984 = scalar_lea.vmem %s4, %s29
          %v985 = vld [vmem:[%s984] sm:$0x1]
          %v987 = vperm.slane %v985, 0
          %v989 = vadd.f32 %v968, %v987
          %v990 = vadd.f32 %v969, %v987
          %v991 = vadd.f32 %v970, %v987
          %v992 = vadd.f32 %v971, %v987
          %v993 = vadd.f32 %v972, %v987
          %v994 = vadd.f32 %v973, %v987
          %v995 = vadd.f32 %v974, %v987
          %v996 = vadd.f32 %v975, %v987
          %v997 = vadd.f32 %v976, %v987
          %v998 = vadd.f32 %v977, %v987
          %v999 = vadd.f32 %v978, %v987
          %v1000 = vadd.f32 %v979, %v987
          %v1001 = vadd.f32 %v980, %v987
          %v1002 = vadd.f32 %v981, %v987
          %v1003 = vadd.f32 %v982, %v987
          %v1004 = vadd.f32 %v983, %v987
          %v1005 = vmax.f32 %v989, 0.0
          %v1006 = vmax.f32 %v990, 0.0
          %v1007 = vmax.f32 %v991, 0.0
          %v1008 = vmax.f32 %v992, 0.0
          %v1009 = vmax.f32 %v993, 0.0
          %v1010 = vmax.f32 %v994, 0.0
          %v1011 = vmax.f32 %v995, 0.0
          %v1012 = vmax.f32 %v996, 0.0
          %v1013 = vmax.f32 %v997, 0.0
          %v1014 = vmax.f32 %v998, 0.0
          %v1015 = vmax.f32 %v999, 0.0
          %v1016 = vmax.f32 %v1000, 0.0
          %v1017 = vmax.f32 %v1001, 0.0
          %v1018 = vmax.f32 %v1002, 0.0
          %v1019 = vmax.f32 %v1003, 0.0
          %v1020 = vmax.f32 %v1004, 0.0
          %v1021 = vlaneseq
          %v1022 = vshrl.u32 %v1021, 7
          %v1023 = vadd.s32 %v1022, 8
          %v1024 = vadd.s32 %v1022, 16
          %v1025 = vadd.s32 %v1022, 24
          %v1026 = vadd.s32 %v1022, 32
          %v1027 = vadd.s32 %v1022, 40
          %v1028 = vadd.s32 %v1022, 48
          %v1029 = vadd.s32 %v1022, 56
          %v1030 = vadd.s32 %v1022, 64
          %v1031 = vadd.s32 %v1022, 72
          %v1032 = vadd.s32 %v1022, 80
          %v1033 = vadd.s32 %v1022, 88
          %v1034 = vadd.s32 %v1022, 96
          %v1035 = vadd.s32 %v1022, 104
          %v1036 = vadd.s32 %v1022, 112
          %v1037 = vadd.s32 %v1022, 120
          %v1038 = vstv %s967
          %v1039 = vadd.s32 %v1038, %v1022
          %v1040 = vadd.s32 %v1038, %v1023
          %v1041 = vadd.s32 %v1038, %v1024
          %v1042 = vadd.s32 %v1038, %v1025
          %v1043 = vadd.s32 %v1038, %v1026
          %v1044 = vadd.s32 %v1038, %v1027
          %v1045 = vadd.s32 %v1038, %v1028
          %v1046 = vadd.s32 %v1038, %v1029
          %v1047 = vadd.s32 %v1038, %v1030
          %v1048 = vadd.s32 %v1038, %v1031
          %v1049 = vadd.s32 %v1038, %v1032
          %v1050 = vadd.s32 %v1038, %v1033
          %v1051 = vadd.s32 %v1038, %v1034
          %v1052 = vadd.s32 %v1038, %v1035
          %v1053 = vadd.s32 %v1038, %v1036
          %v1054 = vadd.s32 %v1038, %v1037
          %vm1055 = vcmp.lt.s32.totalorder %v1039, 16
          %vm1056 = vcmp.lt.s32.totalorder %v1040, 16
          %vm1057 = vcmp.lt.s32.totalorder %v1041, 16
          %vm1058 = vcmp.lt.s32.totalorder %v1042, 16
          %vm1059 = vcmp.lt.s32.totalorder %v1043, 16
          %vm1060 = vcmp.lt.s32.totalorder %v1044, 16
          %vm1061 = vcmp.lt.s32.totalorder %v1045, 16
          %vm1062 = vcmp.lt.s32.totalorder %v1046, 16
          %vm1063 = vcmp.lt.s32.totalorder %v1047, 16
          %vm1064 = vcmp.lt.s32.totalorder %v1048, 16
          %vm1065 = vcmp.lt.s32.totalorder %v1049, 16
          %vm1066 = vcmp.lt.s32.totalorder %v1050, 16
          %vm1067 = vcmp.lt.s32.totalorder %v1051, 16
          %vm1068 = vcmp.lt.s32.totalorder %v1052, 16
          %vm1069 = vcmp.lt.s32.totalorder %v1053, 16
          %vm1070 = vcmp.lt.s32.totalorder %v1054, 16
          %v1071 = vsel %vm1055, %v1005, 0.0
          %v1072 = vsel %vm1056, %v1006, 0.0
          %v1073 = vsel %vm1057, %v1007, 0.0
          %v1074 = vsel %vm1058, %v1008, 0.0
          %v1075 = vsel %vm1059, %v1009, 0.0
          %v1076 = vsel %vm1060, %v1010, 0.0
          %v1077 = vsel %vm1061, %v1011, 0.0
          %v1078 = vsel %vm1062, %v1012, 0.0
          %v1079 = vsel %vm1063, %v1013, 0.0
          %v1080 = vsel %vm1064, %v1014, 0.0
          %v1081 = vsel %vm1065, %v1015, 0.0
          %v1082 = vsel %vm1066, %v1016, 0.0
          %v1083 = vsel %vm1067, %v1017, 0.0
          %v1084 = vsel %vm1068, %v1018, 0.0
          %v1085 = vsel %vm1069, %v1019, 0.0
          %v1086 = vsel %vm1070, %v1020, 0.0
          %v1087 = vpack.c.bf16 %v1071, %v1071
          %v1088 = vpack.c.bf16 %v1072, %v1072
          %v1089 = vpack.c.bf16 %v1073, %v1073
          %v1090 = vpack.c.bf16 %v1074, %v1074
          %v1091 = vpack.c.bf16 %v1075, %v1075
          %v1092 = vpack.c.bf16 %v1076, %v1076
          %v1093 = vpack.c.bf16 %v1077, %v1077
          %v1094 = vpack.c.bf16 %v1078, %v1078
          %v1095 = vpack.c.bf16 %v1079, %v1079
          %v1096 = vpack.c.bf16 %v1080, %v1080
          %v1097 = vpack.c.bf16 %v1081, %v1081
          %v1098 = vpack.c.bf16 %v1082, %v1082
          %v1099 = vpack.c.bf16 %v1083, %v1083
          %v1100 = vpack.c.bf16 %v1084, %v1084
          %v1101 = vpack.c.bf16 %v1085, %v1085
          %v1102 = vpack.c.bf16 %v1086, %v1086
          %s1103 = sshra.s32 %s967, 3
          %s1104 = sand.u32 %s967, 7
          %s1105 = smul.addr %s1103, 4
          %s1106 = scalar_lea.vmem [#allocation2], %s1105
          %1107 = vst [vmem:[%s1106] sm:$0xf] %v1087
          %1108 = vst [vmem:[%s1106 + $0x4] sm:$0xf] %v1088
          %1109 = vst [vmem:[%s1106 + $0x8] sm:$0xf] %v1089
          %1110 = vst [vmem:[%s1106 + $0xc] sm:$0xf] %v1090
          %1111 = vst [vmem:[%s1106 + $0x10] sm:$0xf] %v1091
          %1112 = vst [vmem:[%s1106 + $0x14] sm:$0xf] %v1092
          %1113 = vst [vmem:[%s1106 + $0x18] sm:$0xf] %v1093
          %1114 = vst [vmem:[%s1106 + $0x1c] sm:$0xf] %v1094
          %1115 = vst [vmem:[%s1106 + $0x20] sm:$0xf] %v1095
          %1116 = vst [vmem:[%s1106 + $0x24] sm:$0xf] %v1096
          %1117 = vst [vmem:[%s1106 + $0x28] sm:$0xf] %v1097
          %1118 = vst [vmem:[%s1106 + $0x2c] sm:$0xf] %v1098
          %1119 = vst [vmem:[%s1106 + $0x30] sm:$0xf] %v1099
          %1120 = vst [vmem:[%s1106 + $0x34] sm:$0xf] %v1100
          %1121 = vst [vmem:[%s1106 + $0x38] sm:$0xf] %v1101
          %1122 = vst [vmem:[%s1106 + $0x3c] sm:$0xf] %v1102
          %p1123 = scmp.eq.s32.totalorder %s29, 2
          // Predicated region
          $region97: #{tpu_custom_call.1} parent=95 // pred_check
            %p1124 = pneg %p1123
          $region98: #{tpu_custom_call.1} parent=95 // pred_check_branch
            %1126 = sbr.rel (%p1124) target = $region100
          $region99: #{tpu_custom_call.1} parent=95 // pred_region
            %v1127 = vld [vmem:[#allocation5] sm:$0xff]
            %v1128 = vld [vmem:[%s408] sm:$0xf]
            %v1145 = vunpack.c.l.b16 %v1087
            %v1146 = vunpack.c.l.b16 %v1088
            %v1147 = vunpack.c.l.b16 %v1089
            %v1148 = vunpack.c.l.b16 %v1090
            %v1149 = vunpack.c.l.b16 %v1091
            %v1150 = vunpack.c.l.b16 %v1092
            %v1151 = vunpack.c.l.b16 %v1093
            %v1152 = vunpack.c.l.b16 %v1094
            %v1153 = vunpack.c.l.b16 %v1095
            %v1154 = vunpack.c.l.b16 %v1096
            %v1155 = vunpack.c.l.b16 %v1097
            %v1156 = vunpack.c.l.b16 %v1098
            %v1157 = vunpack.c.l.b16 %v1099
            %v1158 = vunpack.c.l.b16 %v1100
            %v1159 = vunpack.c.l.b16 %v1101
            %v1160 = vunpack.c.l.b16 %v1102
            %v1161 = vpack.c.b16 %v1146, %v1145
            %v1162 = vpack.c.b16 %v1148, %v1147
            %v1163 = vpack.c.b16 %v1150, %v1149
            %v1164 = vpack.c.b16 %v1152, %v1151
            %v1165 = vpack.c.b16 %v1154, %v1153
            %v1166 = vpack.c.b16 %v1156, %v1155
            %v1167 = vpack.c.b16 %v1158, %v1157
            %v1168 = vpack.c.b16 %v1160, %v1159
            %1177 = vmatpush.bf16.msra.mxu0 %v1168
            %1178 = vmatpush.bf16.msra.mxu0 %v1167
            %1179 = vmatpush.bf16.msra.mxu0 %v1166
            %1180 = vmatpush.bf16.msra.mxu0 %v1165
            %1181 = vmatpush.bf16.msra.mxu0 %v1164
            %1182 = vmatpush.bf16.msra.mxu0 %v1163
            %1183 = vmatpush.bf16.msra.mxu0 %v1162
            %1184 = vmatpush.bf16.msra.mxu0 %v1161
            %1185 = vmatmul.bf16.gmra.mxu0 %v1128
            %v1186 = vpop.f32.mrf.mxu0
            %v1187 = vadd.f32 0.0, %v1186
            %v1188 = vpop.f32.mrf.mxu0
            %1189 = vdwg.mxu0
            %v1190 = vadd.f32 %v1127, %v1187
            %1191 = vst [vmem:[#allocation5] sm:$0xff] %v1190
          $region100: #{tpu_custom_call.1} parent=95 // pred_fallthru
            _
        $region96: #{tpu_custom_call.1} parent=55 // pred_fallthru
          _
        %p1192 = scmp.eq.s32.totalorder %s29, 2
        %p1193 = pnand %p1192, %p458
        %p1194 = pneg %p1193
        %p1195 = pnand %p1194, %p461
        %p1196 = pneg %p1195
        // Predicated region
        $region101: #{tpu_custom_call.1} parent=55 // pred_check
          _
        $region102: #{tpu_custom_call.1} parent=55 // pred_check_branch
          %1198 = sbr.rel (%p1195) target = $region104
        $region103: #{tpu_custom_call.1} parent=55 // pred_region
          %v1199 = vld [vmem:[#allocation5] sm:$0xff]
          %v1200 = vpack.c.bf16 %v1199, %v1199
          %v1201 = vld [vmem:[#allocation13] sm:$0xf]
          %v1202 = vld [vmem:[#allocation13 + $0x4] sm:$0xf]
          %v1203 = vld [vmem:[#allocation13 + $0x8] sm:$0xf]
          %v1204 = vld [vmem:[#allocation13 + $0xc] sm:$0xf]
          %v1205 = vld [vmem:[#allocation13 + $0x10] sm:$0xf]
          %v1206 = vld [vmem:[#allocation13 + $0x14] sm:$0xf]
          %v1207 = vld [vmem:[#allocation13 + $0x18] sm:$0xf]
          %v1208 = vld [vmem:[#allocation13 + $0x1c] sm:$0xf]
          %v1209 = vld [vmem:[#allocation13 + $0x20] sm:$0xf]
          %v1210 = vld [vmem:[#allocation13 + $0x24] sm:$0xf]
          %v1211 = vld [vmem:[#allocation13 + $0x28] sm:$0xf]
          %v1212 = vld [vmem:[#allocation13 + $0x2c] sm:$0xf]
          %v1213 = vld [vmem:[#allocation13 + $0x30] sm:$0xf]
          %v1214 = vld [vmem:[#allocation13 + $0x34] sm:$0xf]
          %v1215 = vld [vmem:[#allocation13 + $0x38] sm:$0xf]
          %v1216 = vld [vmem:[#allocation13 + $0x3c] sm:$0xf]
          %v1217 = vld [vmem:[%s6] sm:$0x1]
          %v1219 = vperm.slane %v1217, 0
          %v1237 = vunpack.c.l.b16 %v1201
          %v1238 = vunpack.c.l.b16 %v1202
          %v1239 = vunpack.c.l.b16 %v1203
          %v1240 = vunpack.c.l.b16 %v1204
          %v1241 = vunpack.c.l.b16 %v1205
          %v1242 = vunpack.c.l.b16 %v1206
          %v1243 = vunpack.c.l.b16 %v1207
          %v1244 = vunpack.c.l.b16 %v1208
          %v1245 = vunpack.c.l.b16 %v1209
          %v1246 = vunpack.c.l.b16 %v1210
          %v1247 = vunpack.c.l.b16 %v1211
          %v1248 = vunpack.c.l.b16 %v1212
          %v1249 = vunpack.c.l.b16 %v1213
          %v1250 = vunpack.c.l.b16 %v1214
          %v1251 = vunpack.c.l.b16 %v1215
          %v1252 = vunpack.c.l.b16 %v1216
          %v1253 = vpack.c.b16 %v1238, %v1237
          %v1254 = vpack.c.b16 %v1240, %v1239
          %v1255 = vpack.c.b16 %v1242, %v1241
          %v1256 = vpack.c.b16 %v1244, %v1243
          %v1257 = vpack.c.b16 %v1246, %v1245
          %v1258 = vpack.c.b16 %v1248, %v1247
          %v1259 = vpack.c.b16 %v1250, %v1249
          %v1260 = vpack.c.b16 %v1252, %v1251
          %1269 = vmatpush.bf16.msra.mxu0 %v1260
          %1270 = vmatpush.bf16.msra.mxu0 %v1259
          %1271 = vmatpush.bf16.msra.mxu0 %v1258
          %1272 = vmatpush.bf16.msra.mxu0 %v1257
          %1273 = vmatpush.bf16.msra.mxu0 %v1256
          %1274 = vmatpush.bf16.msra.mxu0 %v1255
          %1275 = vmatpush.bf16.msra.mxu0 %v1254
          %1276 = vmatpush.bf16.msra.mxu0 %v1253
          %1277 = vmatmul.bf16.gmra.mxu0 %v1200
          %v1278 = vpop.f32.mrf.mxu0
          %v1279 = vadd.f32 %v1219, %v1278
          %v1280 = vpop.f32.mrf.mxu0
          %1281 = vdwg.mxu0
          %v1282 = vmax.f32 %v1279, 0.0
          %v1283 = vpack.c.bf16 %v1282, %v1282
          %v1284 = vld [vmem:[#allocation15] sm:$0xf]
          %v1285 = vld [vmem:[#allocation15 + $0x4] sm:$0xf]
          %v1286 = vld [vmem:[#allocation15 + $0x8] sm:$0xf]
          %v1287 = vld [vmem:[#allocation15 + $0xc] sm:$0xf]
          %v1288 = vld [vmem:[#allocation15 + $0x10] sm:$0xf]
          %v1289 = vld [vmem:[#allocation15 + $0x14] sm:$0xf]
          %v1290 = vld [vmem:[#allocation15 + $0x18] sm:$0xf]
          %v1291 = vld [vmem:[#allocation15 + $0x1c] sm:$0xf]
          %v1292 = vld [vmem:[#allocation15 + $0x20] sm:$0xf]
          %v1293 = vld [vmem:[#allocation15 + $0x24] sm:$0xf]
          %v1294 = vld [vmem:[#allocation15 + $0x28] sm:$0xf]
          %v1295 = vld [vmem:[#allocation15 + $0x2c] sm:$0xf]
          %v1296 = vld [vmem:[#allocation15 + $0x30] sm:$0xf]
          %v1297 = vld [vmem:[#allocation15 + $0x34] sm:$0xf]
          %v1298 = vld [vmem:[#allocation15 + $0x38] sm:$0xf]
          %v1299 = vld [vmem:[#allocation15 + $0x3c] sm:$0xf]
          %v1300 = vld [vmem:[%s8] sm:$0x1]
          %v1302 = vperm.slane %v1300, 0
          %v1320 = vunpack.c.l.b16 %v1284
          %v1321 = vunpack.c.l.b16 %v1285
          %v1322 = vunpack.c.l.b16 %v1286
          %v1323 = vunpack.c.l.b16 %v1287
          %v1324 = vunpack.c.l.b16 %v1288
          %v1325 = vunpack.c.l.b16 %v1289
          %v1326 = vunpack.c.l.b16 %v1290
          %v1327 = vunpack.c.l.b16 %v1291
          %v1328 = vunpack.c.l.b16 %v1292
          %v1329 = vunpack.c.l.b16 %v1293
          %v1330 = vunpack.c.l.b16 %v1294
          %v1331 = vunpack.c.l.b16 %v1295
          %v1332 = vunpack.c.l.b16 %v1296
          %v1333 = vunpack.c.l.b16 %v1297
          %v1334 = vunpack.c.l.b16 %v1298
          %v1335 = vunpack.c.l.b16 %v1299
          %v1336 = vpack.c.b16 %v1321, %v1320
          %v1337 = vpack.c.b16 %v1323, %v1322
          %v1338 = vpack.c.b16 %v1325, %v1324
          %v1339 = vpack.c.b16 %v1327, %v1326
          %v1340 = vpack.c.b16 %v1329, %v1328
          %v1341 = vpack.c.b16 %v1331, %v1330
          %v1342 = vpack.c.b16 %v1333, %v1332
          %v1343 = vpack.c.b16 %v1335, %v1334
          %1352 = vmatpush.bf16.msra.mxu0 %v1343
          %1353 = vmatpush.bf16.msra.mxu0 %v1342
          %1354 = vmatpush.bf16.msra.mxu0 %v1341
          %1355 = vmatpush.bf16.msra.mxu0 %v1340
          %1356 = vmatpush.bf16.msra.mxu0 %v1339
          %1357 = vmatpush.bf16.msra.mxu0 %v1338
          %1358 = vmatpush.bf16.msra.mxu0 %v1337
          %1359 = vmatpush.bf16.msra.mxu0 %v1336
          %1360 = vmatmul.bf16.gmra.mxu0 %v1283
          %v1361 = vpop.f32.mrf.mxu0
          %v1362 = vadd.f32 %v1302, %v1361
          %v1363 = vpop.f32.mrf.mxu0
          %1364 = vdwg.mxu0
          %v1365 = vlaneseq
          %v1366 = vand.u32 %v1365, 127
          %vm1367 = vcmp.lt.s32.totalorder %v1366, 4
          %v1368 = vsel %vm1367, %v1362, -1e+30
          %1369 = vmax.xlane.f32.xlu0 %v1368
          %v1370 = vpop.xlane.xlu0 %1369
          %v1371 = vsub.f32 %v1368, %v1370
          %v1372 = vmul.f32 %v1371, 1.442695
          %v1373 = vpow.pop %v1372
          %1374 = vadd.xlane.f32.xlu0 %v1373
          %v1375 = vpop.xlane.xlu0 %1374
          %v1376 = vlog2.pop %v1375
          %v1377 = vmul.f32 %v1376, 0.6931472
          %v1378 = vsub.f32 %v1371, %v1377
          %1379 = vst [vmem:[#allocation16] sm:$0xff] %v1378
        $region104: #{tpu_custom_call.1} parent=55 // pred_fallthru
          _
        // Predicated region
        $region105: #{tpu_custom_call.1} parent=55 // pred_check
          %p1380 = pneg %p261
        $region106: #{tpu_custom_call.1} parent=55 // pred_check_branch
          %1382 = sbr.rel (%p1380) target = $region108
        $region107: #{tpu_custom_call.1} parent=55 // pred_region
          %1384 = vsyncadd [#allocation8], 0
          %s1386 = sshll.u32 [#allocation16], 4
          %s1387 = int_to_ptr.vmem [resolvable:$true] %s1386
          %s1388 = sshll.u32 %s9, 4
          %s1389 = int_to_ptr.hbm [resolvable:$true] %s1388
          %1391 = dma.vmem_to_hbm [thread:$0]  %s1387, 128, %s1389, [#allocation8]
        $region108: #{tpu_custom_call.1} parent=55 // pred_fallthru
          _
        // Predicated region
        $region109: #{tpu_custom_call.1} parent=55 // pred_check
          %p1392 = pneg %p261
        $region110: #{tpu_custom_call.1} parent=55 // pred_check_branch
          %1394 = sbr.rel (%p1392) target = $region112
        $region111: #{tpu_custom_call.1} parent=55 // pred_region
          %1396 = dma.done [#allocation8], 128
        $region112: #{tpu_custom_call.1} parent=55 // pred_fallthru
          _
      $region56: #{tpu_custom_call.1} parent=5 // pred_fallthru
        _
      %p1397 = scmp.le.s32.totalorder 2, %s19
      // Predicated region
      $region113: #{tpu_custom_call.1} parent=5 // pred_check
        %p1398 = pneg %p1397
      $region114: #{tpu_custom_call.1} parent=5 // pred_check_branch
        %1400 = sbr.rel (%p1398) target = $region116
      $region115: #{tpu_custom_call.1} parent=5 // pred_region
        %s1401 = ssub.s32 %s19, 2
      $region116: #{tpu_custom_call.1} parent=5 // pred_fallthru
        _
    $region6: #{tpu_custom_call.1} parent=1 // loop_footer
      %s23 = sadd.s32 1, %s19
    $region7: #{tpu_custom_call.1} parent=1 // loop_footer_branch
      %18 = sbr.rel target = $region3
    $region8: #{tpu_custom_call.1} parent=1 // loop_exit
      _
    %1402 = vsyncpa [#allocation7], 1
    %s1403 = scalar_lea.sflag [#allocation7], 1
    %1404 = vsyncpa %s1403, 1
    %1405 = vsyncpa [#allocation10], 1
    %1406 = vsyncpa [#allocation14], 1
    %1407 = vsyncpa [#allocation8], 1
    %s1408 = scalar_lea.sflag [#allocation8], 1
    %1409 = vsyncpa %s1408, 1

</llo_original>
